<compile_context>
chip_gen: v5e
topology: v5e:2x2
jax: 0.10.0
libtpu: 0.0.40
codegen_flags: <defaults>
</compile_context>

<pallas_src>
import jax
import jax.numpy as jnp
import numpy as np
from jax.experimental import pallas as pl
from jax.experimental.pallas import tpu as pltpu


def _logic_gru_kernel(x_ref, w_ih_t_ref, w_hh_t_ref, w_fc_t_ref,
                      b_gi_ref, b_hn_ref, b_fc_ref,
                      out_ref, hid_ref, gi_scratch):
    """Fused LogicGRU forward.

    x_ref:      (B, T, I)   input sequence
    w_ih_t_ref: (I, 3H)     input->gates weights, pre-transposed
    w_hh_t_ref: (H, 3H)     hidden->gates weights, pre-transposed (gates fused)
    w_fc_t_ref: (H, 2)      FC head weights, pre-transposed
    b_gi_ref:   (1, 3H)     b_ih + [b_hr, b_hz, 0]  (folded input-side bias)
    b_hn_ref:   (1, 3H)     [0, 0, b_hn]            (kept separate: inside r*(...))
    b_fc_ref:   (1, 2)      FC bias
    out_ref:    (B, T, 2)   outputs
    hid_ref:    (B, T, H)   hiddens
    gi_scratch: (B, T, 3H)  VMEM scratch for the precomputed input projection
    """
    B, T, I = x_ref.shape
    H = w_hh_t_ref.shape[0]
    f32 = jnp.float32

    # ---------- Preamble (non-recurrent): input projection for ALL timesteps
    # as one batched MXU matmul instead of T tiny ones.
    x_flat = x_ref[...].astype(f32).reshape(B * T, I)                   # (B*T, I)
    gi = jnp.dot(x_flat, w_ih_t_ref[...], preferred_element_type=f32)   # (B*T, 3H)
    gi = gi + b_gi_ref[...]
    gi_scratch[...] = gi.reshape(B, T, 3 * H)

    w_all = w_hh_t_ref[...]          # (H, 3H) fused per-gate hidden weights
    b_hn = b_hn_ref[...]             # (1, 3H), nonzero only in n-gate lanes

    # ---------- Serial recurrence: fully unrolled, f32 carry, one fused MXU
    # dot per step; r/z/n splits are static lane slices (XLU slot, idle here).
    h = jnp.zeros((B, H), f32)
    for t in range(T):
        gi_t = gi_scratch[:, t, :]                                       # (B, 3H)
        gh = jnp.dot(h, w_all, preferred_element_type=f32) + b_hn        # (B, 3H)
        r = jax.nn.sigmoid(gi_t[:, 0:H] + gh[:, 0:H])
        z = jax.nn.sigmoid(gi_t[:, H:2 * H] + gh[:, H:2 * H])
        n = jnp.tanh(gi_t[:, 2 * H:] + r * gh[:, 2 * H:])
        h = (1.0 - z) * n + z * h
        hid_ref[:, t, :] = h.astype(hid_ref.dtype)

    # ---------- Epilogue (non-recurrent): FC head over all timesteps at once.
    hid_all = hid_ref[...].astype(f32).reshape(B * T, H)                 # (B*T, H)
    out = jnp.dot(hid_all, w_fc_t_ref[...], preferred_element_type=f32)  # (B*T, 2)
    out = out + b_fc_ref[...]
    out_ref[...] = out.reshape(out_ref.shape).astype(out_ref.dtype)


def prepare_gru_params(w_ih, w_hh, b_ih, b_hh, w_fc, b_fc):
    """One-time parameter prep, hoisted out of the per-call (jitted) path.

    PyTorch gate order [r, z, n].  b_hr / b_hz are folded into the input-side
    bias; b_hn stays separate because it is multiplied by r inside the cell.
    """
    f32 = jnp.float32
    H = w_hh.shape[1]
    w_ih_t = jnp.asarray(w_ih, f32).T                                    # (I, 3H)
    w_hh_t = jnp.asarray(w_hh, f32).T                                    # (H, 3H)
    w_fc_t = jnp.asarray(w_fc, f32).T                                    # (H, 2)
    b_ih_f = jnp.asarray(b_ih, f32)
    b_hh_f = jnp.asarray(b_hh, f32)
    b_gi = (b_ih_f + jnp.concatenate(
        [b_hh_f[:2 * H], jnp.zeros((H,), f32)])).reshape(1, 3 * H)       # (1, 3H)
    b_hn = jnp.concatenate(
        [jnp.zeros((2 * H,), f32), b_hh_f[2 * H:]]).reshape(1, 3 * H)    # (1, 3H)
    b_fc2 = jnp.asarray(b_fc, f32).reshape(1, -1)                        # (1, 2)
    return (w_ih_t, w_hh_t, w_fc_t, b_gi, b_hn, b_fc2)


@jax.jit
def logic_gru_forward(x, params):
    """x: (batch, seq, input). Returns (outputs (B,T,2), hiddens (B,T,H))."""
    w_ih_t, w_hh_t, w_fc_t, b_gi, b_hn, b_fc = params
    B, T, I = x.shape
    H = w_hh_t.shape[0]
    n_out = w_fc_t.shape[1]

    vmem = lambda: pl.BlockSpec(memory_space=pltpu.MemorySpace.VMEM)

    outputs, hiddens = pl.pallas_call(
        _logic_gru_kernel,
        out_shape=(jax.ShapeDtypeStruct((B, T, n_out), x.dtype),
                   jax.ShapeDtypeStruct((B, T, H), x.dtype)),
        in_specs=[vmem() for _ in range(7)],
        out_specs=[vmem(), vmem()],
        scratch_shapes=[pltpu.VMEM((B, T, 3 * H), jnp.float32)],
    )(x, w_ih_t, w_hh_t, w_fc_t, b_gi, b_hn, b_fc)
    return outputs, hiddens


def _reference_forward(x, w_ih, w_hh, b_ih, b_hh, w_fc, b_fc):
    """Pure-JAX reference matching torch.nn.GRU(batch_first=True) + Linear."""
    B, T, I = x.shape
    H = w_hh.shape[1]

    def step(h, x_t):
        gi = x_t @ w_ih.T + b_ih
        gh = h @ w_hh.T + b_hh
        i_r, i_z, i_n = gi[:, :H], gi[:, H:2 * H], gi[:, 2 * H:]
        h_r, h_z, h_n = gh[:, :H], gh[:, H:2 * H], gh[:, 2 * H:]
        r = jax.nn.sigmoid(i_r + h_r)
        z = jax.nn.sigmoid(i_z + h_z)
        n = jnp.tanh(i_n + r * h_n)
        h_new = (1.0 - z) * n + z * h
        return h_new, h_new

    h0 = jnp.zeros((B, H), jnp.float32)
    _, hs = jax.lax.scan(step, h0, jnp.transpose(x, (1, 0, 2)))
    hiddens = jnp.transpose(hs, (1, 0, 2))
    outputs = hiddens @ w_fc.T + b_fc
    return outputs, hiddens


if __name__ == "__main__":
    # Small shapes consistent with the module's forward: (batch, seq, input), hidden=32.
    B, T, I, H = 2, 8, 4, 32

    key = jax.random.PRNGKey(0)
    ks = jax.random.split(key, 7)
    k = 1.0 / np.sqrt(H)
    # PyTorch-style uniform(-1/sqrt(H), 1/sqrt(H)) init, gate order [r, z, n].
    w_ih = jax.random.uniform(ks[0], (3 * H, I), jnp.float32, -k, k)
    w_hh = jax.random.uniform(ks[1], (3 * H, H), jnp.float32, -k, k)
    b_ih = jax.random.uniform(ks[2], (3 * H,), jnp.float32, -k, k)
    b_hh = jax.random.uniform(ks[3], (3 * H,), jnp.float32, -k, k)
    w_fc = jax.random.uniform(ks[4], (2, H), jnp.float32, -k, k)
    b_fc = jax.random.uniform(ks[5], (2,), jnp.float32, -k, k)

    x = jax.random.normal(ks[6], (B, T, I), jnp.float32)

    params = prepare_gru_params(w_ih, w_hh, b_ih, b_hh, w_fc, b_fc)

    outputs, hiddens = logic_gru_forward(x, params)
    jax.block_until_ready((outputs, hiddens))

    assert outputs.shape == (B, T, 2)
    assert hiddens.shape == (B, T, H)

    out_ref, hid_ref = _reference_forward(x, w_ih, w_hh, b_ih, b_hh, w_fc, b_fc)
    np.testing.assert_allclose(np.asarray(hiddens), np.asarray(hid_ref), rtol=1e-3, atol=1e-3)
    np.testing.assert_allclose(np.asarray(outputs), np.asarray(out_ref), rtol=1e-3, atol=1e-3)

    print("KERNEL_OK")
</pallas_src>

<mosaic_0001>
module attributes {stable_mosaic.version = 11 : i64} {
  func.func @_logic_gru_kernel(%arg0: memref<2x8x4xf32, #tpu.memory_space<vmem>>, %arg1: memref<4x96xf32, #tpu.memory_space<vmem>>, %arg2: memref<32x96xf32, #tpu.memory_space<vmem>>, %arg3: memref<32x2xf32, #tpu.memory_space<vmem>>, %arg4: memref<1x96xf32, #tpu.memory_space<vmem>>, %arg5: memref<1x96xf32, #tpu.memory_space<vmem>>, %arg6: memref<1x2xf32, #tpu.memory_space<vmem>>, %arg7: memref<2x8x2xf32, #tpu.memory_space<vmem>>, %arg8: memref<2x8x32xf32, #tpu.memory_space<vmem>>, %arg9: memref<2x8x96xf32, #tpu.memory_space<vmem>>) attributes {dimension_semantics = [], scalar_prefetch = 0 : i64, scratch_operands = 1 : i64, tpu.core_type = #tpu.core_type<tc>} {
    %c0 = arith.constant 0 : index
    %c0_0 = arith.constant 0 : index
    %c0_1 = arith.constant 0 : index
    %0 = vector.load %arg0[%c0, %c0_0, %c0_1] : memref<2x8x4xf32, #tpu.memory_space<vmem>>, vector<2x8x4xf32>
    %1 = vector.shape_cast %0 : vector<2x8x4xf32> to vector<16x4xf32>
    %c0_2 = arith.constant 0 : index
    %c0_3 = arith.constant 0 : index
    %2 = vector.load %arg1[%c0_2, %c0_3] : memref<4x96xf32, #tpu.memory_space<vmem>>, vector<4x96xf32>
    %cst = arith.constant dense<0.000000e+00> : vector<16x96xf32>
    %3 = tpu.matmul %1, %2, %cst {dimension_numbers = #tpu.dot_dimension_numbers<[1], [0], [0], [1], [0, 0, 1, 1], [], []>} : vector<16x4xf32>, vector<4x96xf32>, vector<16x96xf32> -> vector<16x96xf32>
    %c0_4 = arith.constant 0 : index
    %c0_5 = arith.constant 0 : index
    %4 = vector.load %arg4[%c0_4, %c0_5] : memref<1x96xf32, #tpu.memory_space<vmem>>, vector<1x96xf32>
    %5 = vector.broadcast %4 : vector<1x96xf32> to vector<16x96xf32>
    %6 = arith.addf %3, %5 : vector<16x96xf32>
    %7 = vector.shape_cast %6 : vector<16x96xf32> to vector<2x8x96xf32>
    %c0_6 = arith.constant 0 : index
    %c0_7 = arith.constant 0 : index
    %c0_8 = arith.constant 0 : index
    %8 = vector.load %arg9[%c0_6, %c0_7, %c0_8] : memref<2x8x96xf32, #tpu.memory_space<vmem>>, vector<2x8x96xf32>
    tpu.vector_store %arg9[%c0_6, %c0_7, %c0_8], %7 {strides = array<i32>} : memref<2x8x96xf32, #tpu.memory_space<vmem>>, vector<2x8x96xf32>,
    %c0_9 = arith.constant 0 : index
    %c0_10 = arith.constant 0 : index
    %9 = vector.load %arg2[%c0_9, %c0_10] : memref<32x96xf32, #tpu.memory_space<vmem>>, vector<32x96xf32>
    %c0_11 = arith.constant 0 : index
    %c0_12 = arith.constant 0 : index
    %10 = vector.load %arg5[%c0_11, %c0_12] : memref<1x96xf32, #tpu.memory_space<vmem>>, vector<1x96xf32>
    %cst_13 = arith.constant 0.000000e+00 : f32
    %11 = vector.broadcast %cst_13 : f32 to vector<2x32xf32>
    %c0_14 = arith.constant 0 : index
    %c0_15 = arith.constant 0 : index
    %c0_16 = arith.constant 0 : index
    %12 = vector.load %arg9[%c0_14, %c0_15, %c0_16] : memref<2x8x96xf32, #tpu.memory_space<vmem>>, vector<2x1x96xf32>
    %13 = vector.shape_cast %12 : vector<2x1x96xf32> to vector<2x96xf32>
    %cst_17 = arith.constant dense<0.000000e+00> : vector<2x96xf32>
    %14 = tpu.matmul %11, %9, %cst_17 {dimension_numbers = #tpu.dot_dimension_numbers<[1], [0], [0], [1], [0, 0, 1, 1], [], []>} : vector<2x32xf32>, vector<32x96xf32>, vector<2x96xf32> -> vector<2x96xf32>
    %15 = vector.broadcast %10 : vector<1x96xf32> to vector<2x96xf32>
    %16 = arith.addf %14, %15 : vector<2x96xf32>
    %17 = vector.extract_strided_slice %13 {offsets = [0, 0], sizes = [2, 32], strides = [1, 1]} : vector<2x96xf32> to vector<2x32xf32>
    %18 = vector.extract_strided_slice %16 {offsets = [0, 0], sizes = [2, 32], strides = [1, 1]} : vector<2x96xf32> to vector<2x32xf32>
    %19 = arith.addf %17, %18 : vector<2x32xf32>
    %20 = arith.negf %19 : vector<2x32xf32>
    %21 = math.exp %20 : vector<2x32xf32>
    %cst_18 = arith.constant 1.000000e+00 : f32
    %22 = vector.broadcast %cst_18 : f32 to vector<2x32xf32>
    %23 = arith.addf %22, %21 : vector<2x32xf32>
    %24 = arith.divf %22, %23 : vector<2x32xf32>
    %25 = vector.extract_strided_slice %13 {offsets = [0, 32], sizes = [2, 32], strides = [1, 1]} : vector<2x96xf32> to vector<2x32xf32>
    %26 = vector.extract_strided_slice %16 {offsets = [0, 32], sizes = [2, 32], strides = [1, 1]} : vector<2x96xf32> to vector<2x32xf32>
    %27 = arith.addf %25, %26 : vector<2x32xf32>
    %28 = arith.negf %27 : vector<2x32xf32>
    %29 = math.exp %28 : vector<2x32xf32>
    %cst_19 = arith.constant 1.000000e+00 : f32
    %30 = vector.broadcast %cst_19 : f32 to vector<2x32xf32>
    %31 = arith.addf %30, %29 : vector<2x32xf32>
    %32 = arith.divf %30, %31 : vector<2x32xf32>
    %33 = vector.extract_strided_slice %13 {offsets = [0, 64], sizes = [2, 32], strides = [1, 1]} : vector<2x96xf32> to vector<2x32xf32>
    %34 = vector.extract_strided_slice %16 {offsets = [0, 64], sizes = [2, 32], strides = [1, 1]} : vector<2x96xf32> to vector<2x32xf32>
    %35 = arith.mulf %24, %34 : vector<2x32xf32>
    %36 = arith.addf %33, %35 : vector<2x32xf32>
    %37 = math.tanh %36 : vector<2x32xf32>
    %cst_20 = arith.constant 1.000000e+00 : f32
    %38 = vector.broadcast %cst_20 : f32 to vector<2x32xf32>
    %39 = arith.subf %38, %32 : vector<2x32xf32>
    %40 = arith.mulf %39, %37 : vector<2x32xf32>
    %41 = arith.mulf %32, %11 : vector<2x32xf32>
    %42 = arith.addf %40, %41 : vector<2x32xf32>
    %c0_21 = arith.constant 0 : index
    %c0_22 = arith.constant 0 : index
    %c0_23 = arith.constant 0 : index
    %43 = vector.load %arg8[%c0_21, %c0_22, %c0_23] : memref<2x8x32xf32, #tpu.memory_space<vmem>>, vector<2x1x32xf32>
    %44 = vector.shape_cast %43 : vector<2x1x32xf32> to vector<2x32xf32>
    %45 = vector.shape_cast %42 : vector<2x32xf32> to vector<2x1x32xf32>
    tpu.vector_store %arg8[%c0_21, %c0_22, %c0_23], %45 {strides = array<i32>} : memref<2x8x32xf32, #tpu.memory_space<vmem>>, vector<2x1x32xf32>,
    %c0_24 = arith.constant 0 : index
    %c1 = arith.constant 1 : index
    %c0_25 = arith.constant 0 : index
    %46 = vector.load %arg9[%c0_24, %c1, %c0_25] : memref<2x8x96xf32, #tpu.memory_space<vmem>>, vector<2x1x96xf32>
    %47 = vector.shape_cast %46 : vector<2x1x96xf32> to vector<2x96xf32>
    %cst_26 = arith.constant dense<0.000000e+00> : vector<2x96xf32>
    %48 = tpu.matmul %42, %9, %cst_26 {dimension_numbers = #tpu.dot_dimension_numbers<[1], [0], [0], [1], [0, 0, 1, 1], [], []>} : vector<2x32xf32>, vector<32x96xf32>, vector<2x96xf32> -> vector<2x96xf32>
    %49 = vector.broadcast %10 : vector<1x96xf32> to vector<2x96xf32>
    %50 = arith.addf %48, %49 : vector<2x96xf32>
    %51 = vector.extract_strided_slice %47 {offsets = [0, 0], sizes = [2, 32], strides = [1, 1]} : vector<2x96xf32> to vector<2x32xf32>
    %52 = vector.extract_strided_slice %50 {offsets = [0, 0], sizes = [2, 32], strides = [1, 1]} : vector<2x96xf32> to vector<2x32xf32>
    %53 = arith.addf %51, %52 : vector<2x32xf32>
    %54 = arith.negf %53 : vector<2x32xf32>
    %55 = math.exp %54 : vector<2x32xf32>
    %cst_27 = arith.constant 1.000000e+00 : f32
    %56 = vector.broadcast %cst_27 : f32 to vector<2x32xf32>
    %57 = arith.addf %56, %55 : vector<2x32xf32>
    %58 = arith.divf %56, %57 : vector<2x32xf32>
    %59 = vector.extract_strided_slice %47 {offsets = [0, 32], sizes = [2, 32], strides = [1, 1]} : vector<2x96xf32> to vector<2x32xf32>
    %60 = vector.extract_strided_slice %50 {offsets = [0, 32], sizes = [2, 32], strides = [1, 1]} : vector<2x96xf32> to vector<2x32xf32>
    %61 = arith.addf %59, %60 : vector<2x32xf32>
    %62 = arith.negf %61 : vector<2x32xf32>
    %63 = math.exp %62 : vector<2x32xf32>
    %cst_28 = arith.constant 1.000000e+00 : f32
    %64 = vector.broadcast %cst_28 : f32 to vector<2x32xf32>
    %65 = arith.addf %64, %63 : vector<2x32xf32>
    %66 = arith.divf %64, %65 : vector<2x32xf32>
    %67 = vector.extract_strided_slice %47 {offsets = [0, 64], sizes = [2, 32], strides = [1, 1]} : vector<2x96xf32> to vector<2x32xf32>
    %68 = vector.extract_strided_slice %50 {offsets = [0, 64], sizes = [2, 32], strides = [1, 1]} : vector<2x96xf32> to vector<2x32xf32>
    %69 = arith.mulf %58, %68 : vector<2x32xf32>
    %70 = arith.addf %67, %69 : vector<2x32xf32>
    %71 = math.tanh %70 : vector<2x32xf32>
    %cst_29 = arith.constant 1.000000e+00 : f32
    %72 = vector.broadcast %cst_29 : f32 to vector<2x32xf32>
    %73 = arith.subf %72, %66 : vector<2x32xf32>
    %74 = arith.mulf %73, %71 : vector<2x32xf32>
    %75 = arith.mulf %66, %42 : vector<2x32xf32>
    %76 = arith.addf %74, %75 : vector<2x32xf32>
    %c0_30 = arith.constant 0 : index
    %c1_31 = arith.constant 1 : index
    %c0_32 = arith.constant 0 : index
    %77 = vector.load %arg8[%c0_30, %c1_31, %c0_32] : memref<2x8x32xf32, #tpu.memory_space<vmem>>, vector<2x1x32xf32>
    %78 = vector.shape_cast %77 : vector<2x1x32xf32> to vector<2x32xf32>
    %79 = vector.shape_cast %76 : vector<2x32xf32> to vector<2x1x32xf32>
    tpu.vector_store %arg8[%c0_30, %c1_31, %c0_32], %79 {strides = array<i32>} : memref<2x8x32xf32, #tpu.memory_space<vmem>>, vector<2x1x32xf32>,
    %c0_33 = arith.constant 0 : index
    %c2 = arith.constant 2 : index
    %c0_34 = arith.constant 0 : index
    %80 = vector.load %arg9[%c0_33, %c2, %c0_34] : memref<2x8x96xf32, #tpu.memory_space<vmem>>, vector<2x1x96xf32>
    %81 = vector.shape_cast %80 : vector<2x1x96xf32> to vector<2x96xf32>
    %cst_35 = arith.constant dense<0.000000e+00> : vector<2x96xf32>
    %82 = tpu.matmul %76, %9, %cst_35 {dimension_numbers = #tpu.dot_dimension_numbers<[1], [0], [0], [1], [0, 0, 1, 1], [], []>} : vector<2x32xf32>, vector<32x96xf32>, vector<2x96xf32> -> vector<2x96xf32>
    %83 = vector.broadcast %10 : vector<1x96xf32> to vector<2x96xf32>
    %84 = arith.addf %82, %83 : vector<2x96xf32>
    %85 = vector.extract_strided_slice %81 {offsets = [0, 0], sizes = [2, 32], strides = [1, 1]} : vector<2x96xf32> to vector<2x32xf32>
    %86 = vector.extract_strided_slice %84 {offsets = [0, 0], sizes = [2, 32], strides = [1, 1]} : vector<2x96xf32> to vector<2x32xf32>
    %87 = arith.addf %85, %86 : vector<2x32xf32>
    %88 = arith.negf %87 : vector<2x32xf32>
    %89 = math.exp %88 : vector<2x32xf32>
    %cst_36 = arith.constant 1.000000e+00 : f32
    %90 = vector.broadcast %cst_36 : f32 to vector<2x32xf32>
    %91 = arith.addf %90, %89 : vector<2x32xf32>
    %92 = arith.divf %90, %91 : vector<2x32xf32>
    %93 = vector.extract_strided_slice %81 {offsets = [0, 32], sizes = [2, 32], strides = [1, 1]} : vector<2x96xf32> to vector<2x32xf32>
    %94 = vector.extract_strided_slice %84 {offsets = [0, 32], sizes = [2, 32], strides = [1, 1]} : vector<2x96xf32> to vector<2x32xf32>
    %95 = arith.addf %93, %94 : vector<2x32xf32>
    %96 = arith.negf %95 : vector<2x32xf32>
    %97 = math.exp %96 : vector<2x32xf32>
    %cst_37 = arith.constant 1.000000e+00 : f32
    %98 = vector.broadcast %cst_37 : f32 to vector<2x32xf32>
    %99 = arith.addf %98, %97 : vector<2x32xf32>
    %100 = arith.divf %98, %99 : vector<2x32xf32>
    %101 = vector.extract_strided_slice %81 {offsets = [0, 64], sizes = [2, 32], strides = [1, 1]} : vector<2x96xf32> to vector<2x32xf32>
    %102 = vector.extract_strided_slice %84 {offsets = [0, 64], sizes = [2, 32], strides = [1, 1]} : vector<2x96xf32> to vector<2x32xf32>
    %103 = arith.mulf %92, %102 : vector<2x32xf32>
    %104 = arith.addf %101, %103 : vector<2x32xf32>
    %105 = math.tanh %104 : vector<2x32xf32>
    %cst_38 = arith.constant 1.000000e+00 : f32
    %106 = vector.broadcast %cst_38 : f32 to vector<2x32xf32>
    %107 = arith.subf %106, %100 : vector<2x32xf32>
    %108 = arith.mulf %107, %105 : vector<2x32xf32>
    %109 = arith.mulf %100, %76 : vector<2x32xf32>
    %110 = arith.addf %108, %109 : vector<2x32xf32>
    %c0_39 = arith.constant 0 : index
    %c2_40 = arith.constant 2 : index
    %c0_41 = arith.constant 0 : index
    %111 = vector.load %arg8[%c0_39, %c2_40, %c0_41] : memref<2x8x32xf32, #tpu.memory_space<vmem>>, vector<2x1x32xf32>
    %112 = vector.shape_cast %111 : vector<2x1x32xf32> to vector<2x32xf32>
    %113 = vector.shape_cast %110 : vector<2x32xf32> to vector<2x1x32xf32>
    tpu.vector_store %arg8[%c0_39, %c2_40, %c0_41], %113 {strides = array<i32>} : memref<2x8x32xf32, #tpu.memory_space<vmem>>, vector<2x1x32xf32>,
    %c0_42 = arith.constant 0 : index
    %c3 = arith.constant 3 : index
    %c0_43 = arith.constant 0 : index
    %114 = vector.load %arg9[%c0_42, %c3, %c0_43] : memref<2x8x96xf32, #tpu.memory_space<vmem>>, vector<2x1x96xf32>
    %115 = vector.shape_cast %114 : vector<2x1x96xf32> to vector<2x96xf32>
    %cst_44 = arith.constant dense<0.000000e+00> : vector<2x96xf32>
    %116 = tpu.matmul %110, %9, %cst_44 {dimension_numbers = #tpu.dot_dimension_numbers<[1], [0], [0], [1], [0, 0, 1, 1], [], []>} : vector<2x32xf32>, vector<32x96xf32>, vector<2x96xf32> -> vector<2x96xf32>
    %117 = vector.broadcast %10 : vector<1x96xf32> to vector<2x96xf32>
    %118 = arith.addf %116, %117 : vector<2x96xf32>
    %119 = vector.extract_strided_slice %115 {offsets = [0, 0], sizes = [2, 32], strides = [1, 1]} : vector<2x96xf32> to vector<2x32xf32>
    %120 = vector.extract_strided_slice %118 {offsets = [0, 0], sizes = [2, 32], strides = [1, 1]} : vector<2x96xf32> to vector<2x32xf32>
    %121 = arith.addf %119, %120 : vector<2x32xf32>
    %122 = arith.negf %121 : vector<2x32xf32>
    %123 = math.exp %122 : vector<2x32xf32>
    %cst_45 = arith.constant 1.000000e+00 : f32
    %124 = vector.broadcast %cst_45 : f32 to vector<2x32xf32>
    %125 = arith.addf %124, %123 : vector<2x32xf32>
    %126 = arith.divf %124, %125 : vector<2x32xf32>
    %127 = vector.extract_strided_slice %115 {offsets = [0, 32], sizes = [2, 32], strides = [1, 1]} : vector<2x96xf32> to vector<2x32xf32>
    %128 = vector.extract_strided_slice %118 {offsets = [0, 32], sizes = [2, 32], strides = [1, 1]} : vector<2x96xf32> to vector<2x32xf32>
    %129 = arith.addf %127, %128 : vector<2x32xf32>
    %130 = arith.negf %129 : vector<2x32xf32>
    %131 = math.exp %130 : vector<2x32xf32>
    %cst_46 = arith.constant 1.000000e+00 : f32
    %132 = vector.broadcast %cst_46 : f32 to vector<2x32xf32>
    %133 = arith.addf %132, %131 : vector<2x32xf32>
    %134 = arith.divf %132, %133 : vector<2x32xf32>
    %135 = vector.extract_strided_slice %115 {offsets = [0, 64], sizes = [2, 32], strides = [1, 1]} : vector<2x96xf32> to vector<2x32xf32>
    %136 = vector.extract_strided_slice %118 {offsets = [0, 64], sizes = [2, 32], strides = [1, 1]} : vector<2x96xf32> to vector<2x32xf32>
    %137 = arith.mulf %126, %136 : vector<2x32xf32>
    %138 = arith.addf %135, %137 : vector<2x32xf32>
    %139 = math.tanh %138 : vector<2x32xf32>
    %cst_47 = arith.constant 1.000000e+00 : f32
    %140 = vector.broadcast %cst_47 : f32 to vector<2x32xf32>
    %141 = arith.subf %140, %134 : vector<2x32xf32>
    %142 = arith.mulf %141, %139 : vector<2x32xf32>
    %143 = arith.mulf %134, %110 : vector<2x32xf32>
    %144 = arith.addf %142, %143 : vector<2x32xf32>
    %c0_48 = arith.constant 0 : index
    %c3_49 = arith.constant 3 : index
    %c0_50 = arith.constant 0 : index
    %145 = vector.load %arg8[%c0_48, %c3_49, %c0_50] : memref<2x8x32xf32, #tpu.memory_space<vmem>>, vector<2x1x32xf32>
    %146 = vector.shape_cast %145 : vector<2x1x32xf32> to vector<2x32xf32>
    %147 = vector.shape_cast %144 : vector<2x32xf32> to vector<2x1x32xf32>
    tpu.vector_store %arg8[%c0_48, %c3_49, %c0_50], %147 {strides = array<i32>} : memref<2x8x32xf32, #tpu.memory_space<vmem>>, vector<2x1x32xf32>,
    %c0_51 = arith.constant 0 : index
    %c4 = arith.constant 4 : index
    %c0_52 = arith.constant 0 : index
    %148 = vector.load %arg9[%c0_51, %c4, %c0_52] : memref<2x8x96xf32, #tpu.memory_space<vmem>>, vector<2x1x96xf32>
    %149 = vector.shape_cast %148 : vector<2x1x96xf32> to vector<2x96xf32>
    %cst_53 = arith.constant dense<0.000000e+00> : vector<2x96xf32>
    %150 = tpu.matmul %144, %9, %cst_53 {dimension_numbers = #tpu.dot_dimension_numbers<[1], [0], [0], [1], [0, 0, 1, 1], [], []>} : vector<2x32xf32>, vector<32x96xf32>, vector<2x96xf32> -> vector<2x96xf32>
    %151 = vector.broadcast %10 : vector<1x96xf32> to vector<2x96xf32>
    %152 = arith.addf %150, %151 : vector<2x96xf32>
    %153 = vector.extract_strided_slice %149 {offsets = [0, 0], sizes = [2, 32], strides = [1, 1]} : vector<2x96xf32> to vector<2x32xf32>
    %154 = vector.extract_strided_slice %152 {offsets = [0, 0], sizes = [2, 32], strides = [1, 1]} : vector<2x96xf32> to vector<2x32xf32>
    %155 = arith.addf %153, %154 : vector<2x32xf32>
    %156 = arith.negf %155 : vector<2x32xf32>
    %157 = math.exp %156 : vector<2x32xf32>
    %cst_54 = arith.constant 1.000000e+00 : f32
    %158 = vector.broadcast %cst_54 : f32 to vector<2x32xf32>
    %159 = arith.addf %158, %157 : vector<2x32xf32>
    %160 = arith.divf %158, %159 : vector<2x32xf32>
    %161 = vector.extract_strided_slice %149 {offsets = [0, 32], sizes = [2, 32], strides = [1, 1]} : vector<2x96xf32> to vector<2x32xf32>
    %162 = vector.extract_strided_slice %152 {offsets = [0, 32], sizes = [2, 32], strides = [1, 1]} : vector<2x96xf32> to vector<2x32xf32>
    %163 = arith.addf %161, %162 : vector<2x32xf32>
    %164 = arith.negf %163 : vector<2x32xf32>
    %165 = math.exp %164 : vector<2x32xf32>
    %cst_55 = arith.constant 1.000000e+00 : f32
    %166 = vector.broadcast %cst_55 : f32 to vector<2x32xf32>
    %167 = arith.addf %166, %165 : vector<2x32xf32>
    %168 = arith.divf %166, %167 : vector<2x32xf32>
    %169 = vector.extract_strided_slice %149 {offsets = [0, 64], sizes = [2, 32], strides = [1, 1]} : vector<2x96xf32> to vector<2x32xf32>
    %170 = vector.extract_strided_slice %152 {offsets = [0, 64], sizes = [2, 32], strides = [1, 1]} : vector<2x96xf32> to vector<2x32xf32>
    %171 = arith.mulf %160, %170 : vector<2x32xf32>
    %172 = arith.addf %169, %171 : vector<2x32xf32>
    %173 = math.tanh %172 : vector<2x32xf32>
    %cst_56 = arith.constant 1.000000e+00 : f32
    %174 = vector.broadcast %cst_56 : f32 to vector<2x32xf32>
    %175 = arith.subf %174, %168 : vector<2x32xf32>
    %176 = arith.mulf %175, %173 : vector<2x32xf32>
    %177 = arith.mulf %168, %144 : vector<2x32xf32>
    %178 = arith.addf %176, %177 : vector<2x32xf32>
    %c0_57 = arith.constant 0 : index
    %c4_58 = arith.constant 4 : index
    %c0_59 = arith.constant 0 : index
    %179 = vector.load %arg8[%c0_57, %c4_58, %c0_59] : memref<2x8x32xf32, #tpu.memory_space<vmem>>, vector<2x1x32xf32>
    %180 = vector.shape_cast %179 : vector<2x1x32xf32> to vector<2x32xf32>
    %181 = vector.shape_cast %178 : vector<2x32xf32> to vector<2x1x32xf32>
    tpu.vector_store %arg8[%c0_57, %c4_58, %c0_59], %181 {strides = array<i32>} : memref<2x8x32xf32, #tpu.memory_space<vmem>>, vector<2x1x32xf32>,
    %c0_60 = arith.constant 0 : index
    %c5 = arith.constant 5 : index
    %c0_61 = arith.constant 0 : index
    %182 = vector.load %arg9[%c0_60, %c5, %c0_61] : memref<2x8x96xf32, #tpu.memory_space<vmem>>, vector<2x1x96xf32>
    %183 = vector.shape_cast %182 : vector<2x1x96xf32> to vector<2x96xf32>
    %cst_62 = arith.constant dense<0.000000e+00> : vector<2x96xf32>
    %184 = tpu.matmul %178, %9, %cst_62 {dimension_numbers = #tpu.dot_dimension_numbers<[1], [0], [0], [1], [0, 0, 1, 1], [], []>} : vector<2x32xf32>, vector<32x96xf32>, vector<2x96xf32> -> vector<2x96xf32>
    %185 = vector.broadcast %10 : vector<1x96xf32> to vector<2x96xf32>
    %186 = arith.addf %184, %185 : vector<2x96xf32>
    %187 = vector.extract_strided_slice %183 {offsets = [0, 0], sizes = [2, 32], strides = [1, 1]} : vector<2x96xf32> to vector<2x32xf32>
    %188 = vector.extract_strided_slice %186 {offsets = [0, 0], sizes = [2, 32], strides = [1, 1]} : vector<2x96xf32> to vector<2x32xf32>
    %189 = arith.addf %187, %188 : vector<2x32xf32>
    %190 = arith.negf %189 : vector<2x32xf32>
    %191 = math.exp %190 : vector<2x32xf32>
    %cst_63 = arith.constant 1.000000e+00 : f32
    %192 = vector.broadcast %cst_63 : f32 to vector<2x32xf32>
    %193 = arith.addf %192, %191 : vector<2x32xf32>
    %194 = arith.divf %192, %193 : vector<2x32xf32>
    %195 = vector.extract_strided_slice %183 {offsets = [0, 32], sizes = [2, 32], strides = [1, 1]} : vector<2x96xf32> to vector<2x32xf32>
    %196 = vector.extract_strided_slice %186 {offsets = [0, 32], sizes = [2, 32], strides = [1, 1]} : vector<2x96xf32> to vector<2x32xf32>
    %197 = arith.addf %195, %196 : vector<2x32xf32>
    %198 = arith.negf %197 : vector<2x32xf32>
    %199 = math.exp %198 : vector<2x32xf32>
    %cst_64 = arith.constant 1.000000e+00 : f32
    %200 = vector.broadcast %cst_64 : f32 to vector<2x32xf32>
    %201 = arith.addf %200, %199 : vector<2x32xf32>
    %202 = arith.divf %200, %201 : vector<2x32xf32>
    %203 = vector.extract_strided_slice %183 {offsets = [0, 64], sizes = [2, 32], strides = [1, 1]} : vector<2x96xf32> to vector<2x32xf32>
    %204 = vector.extract_strided_slice %186 {offsets = [0, 64], sizes = [2, 32], strides = [1, 1]} : vector<2x96xf32> to vector<2x32xf32>
    %205 = arith.mulf %194, %204 : vector<2x32xf32>
    %206 = arith.addf %203, %205 : vector<2x32xf32>
    %207 = math.tanh %206 : vector<2x32xf32>
    %cst_65 = arith.constant 1.000000e+00 : f32
    %208 = vector.broadcast %cst_65 : f32 to vector<2x32xf32>
    %209 = arith.subf %208, %202 : vector<2x32xf32>
    %210 = arith.mulf %209, %207 : vector<2x32xf32>
    %211 = arith.mulf %202, %178 : vector<2x32xf32>
    %212 = arith.addf %210, %211 : vector<2x32xf32>
    %c0_66 = arith.constant 0 : index
    %c5_67 = arith.constant 5 : index
    %c0_68 = arith.constant 0 : index
    %213 = vector.load %arg8[%c0_66, %c5_67, %c0_68] : memref<2x8x32xf32, #tpu.memory_space<vmem>>, vector<2x1x32xf32>
    %214 = vector.shape_cast %213 : vector<2x1x32xf32> to vector<2x32xf32>
    %215 = vector.shape_cast %212 : vector<2x32xf32> to vector<2x1x32xf32>
    tpu.vector_store %arg8[%c0_66, %c5_67, %c0_68], %215 {strides = array<i32>} : memref<2x8x32xf32, #tpu.memory_space<vmem>>, vector<2x1x32xf32>,
    %c0_69 = arith.constant 0 : index
    %c6 = arith.constant 6 : index
    %c0_70 = arith.constant 0 : index
    %216 = vector.load %arg9[%c0_69, %c6, %c0_70] : memref<2x8x96xf32, #tpu.memory_space<vmem>>, vector<2x1x96xf32>
    %217 = vector.shape_cast %216 : vector<2x1x96xf32> to vector<2x96xf32>
    %cst_71 = arith.constant dense<0.000000e+00> : vector<2x96xf32>
    %218 = tpu.matmul %212, %9, %cst_71 {dimension_numbers = #tpu.dot_dimension_numbers<[1], [0], [0], [1], [0, 0, 1, 1], [], []>} : vector<2x32xf32>, vector<32x96xf32>, vector<2x96xf32> -> vector<2x96xf32>
    %219 = vector.broadcast %10 : vector<1x96xf32> to vector<2x96xf32>
    %220 = arith.addf %218, %219 : vector<2x96xf32>
    %221 = vector.extract_strided_slice %217 {offsets = [0, 0], sizes = [2, 32], strides = [1, 1]} : vector<2x96xf32> to vector<2x32xf32>
    %222 = vector.extract_strided_slice %220 {offsets = [0, 0], sizes = [2, 32], strides = [1, 1]} : vector<2x96xf32> to vector<2x32xf32>
    %223 = arith.addf %221, %222 : vector<2x32xf32>
    %224 = arith.negf %223 : vector<2x32xf32>
    %225 = math.exp %224 : vector<2x32xf32>
    %cst_72 = arith.constant 1.000000e+00 : f32
    %226 = vector.broadcast %cst_72 : f32 to vector<2x32xf32>
    %227 = arith.addf %226, %225 : vector<2x32xf32>
    %228 = arith.divf %226, %227 : vector<2x32xf32>
    %229 = vector.extract_strided_slice %217 {offsets = [0, 32], sizes = [2, 32], strides = [1, 1]} : vector<2x96xf32> to vector<2x32xf32>
    %230 = vector.extract_strided_slice %220 {offsets = [0, 32], sizes = [2, 32], strides = [1, 1]} : vector<2x96xf32> to vector<2x32xf32>
    %231 = arith.addf %229, %230 : vector<2x32xf32>
    %232 = arith.negf %231 : vector<2x32xf32>
    %233 = math.exp %232 : vector<2x32xf32>
    %cst_73 = arith.constant 1.000000e+00 : f32
    %234 = vector.broadcast %cst_73 : f32 to vector<2x32xf32>
    %235 = arith.addf %234, %233 : vector<2x32xf32>
    %236 = arith.divf %234, %235 : vector<2x32xf32>
    %237 = vector.extract_strided_slice %217 {offsets = [0, 64], sizes = [2, 32], strides = [1, 1]} : vector<2x96xf32> to vector<2x32xf32>
    %238 = vector.extract_strided_slice %220 {offsets = [0, 64], sizes = [2, 32], strides = [1, 1]} : vector<2x96xf32> to vector<2x32xf32>
    %239 = arith.mulf %228, %238 : vector<2x32xf32>
    %240 = arith.addf %237, %239 : vector<2x32xf32>
    %241 = math.tanh %240 : vector<2x32xf32>
    %cst_74 = arith.constant 1.000000e+00 : f32
    %242 = vector.broadcast %cst_74 : f32 to vector<2x32xf32>
    %243 = arith.subf %242, %236 : vector<2x32xf32>
    %244 = arith.mulf %243, %241 : vector<2x32xf32>
    %245 = arith.mulf %236, %212 : vector<2x32xf32>
    %246 = arith.addf %244, %245 : vector<2x32xf32>
    %c0_75 = arith.constant 0 : index
    %c6_76 = arith.constant 6 : index
    %c0_77 = arith.constant 0 : index
    %247 = vector.load %arg8[%c0_75, %c6_76, %c0_77] : memref<2x8x32xf32, #tpu.memory_space<vmem>>, vector<2x1x32xf32>
    %248 = vector.shape_cast %247 : vector<2x1x32xf32> to vector<2x32xf32>
    %249 = vector.shape_cast %246 : vector<2x32xf32> to vector<2x1x32xf32>
    tpu.vector_store %arg8[%c0_75, %c6_76, %c0_77], %249 {strides = array<i32>} : memref<2x8x32xf32, #tpu.memory_space<vmem>>, vector<2x1x32xf32>,
    %c0_78 = arith.constant 0 : index
    %c7 = arith.constant 7 : index
    %c0_79 = arith.constant 0 : index
    %250 = vector.load %arg9[%c0_78, %c7, %c0_79] : memref<2x8x96xf32, #tpu.memory_space<vmem>>, vector<2x1x96xf32>
    %251 = vector.shape_cast %250 : vector<2x1x96xf32> to vector<2x96xf32>
    %cst_80 = arith.constant dense<0.000000e+00> : vector<2x96xf32>
    %252 = tpu.matmul %246, %9, %cst_80 {dimension_numbers = #tpu.dot_dimension_numbers<[1], [0], [0], [1], [0, 0, 1, 1], [], []>} : vector<2x32xf32>, vector<32x96xf32>, vector<2x96xf32> -> vector<2x96xf32>
    %253 = vector.broadcast %10 : vector<1x96xf32> to vector<2x96xf32>
    %254 = arith.addf %252, %253 : vector<2x96xf32>
    %255 = vector.extract_strided_slice %251 {offsets = [0, 0], sizes = [2, 32], strides = [1, 1]} : vector<2x96xf32> to vector<2x32xf32>
    %256 = vector.extract_strided_slice %254 {offsets = [0, 0], sizes = [2, 32], strides = [1, 1]} : vector<2x96xf32> to vector<2x32xf32>
    %257 = arith.addf %255, %256 : vector<2x32xf32>
    %258 = arith.negf %257 : vector<2x32xf32>
    %259 = math.exp %258 : vector<2x32xf32>
    %cst_81 = arith.constant 1.000000e+00 : f32
    %260 = vector.broadcast %cst_81 : f32 to vector<2x32xf32>
    %261 = arith.addf %260, %259 : vector<2x32xf32>
    %262 = arith.divf %260, %261 : vector<2x32xf32>
    %263 = vector.extract_strided_slice %251 {offsets = [0, 32], sizes = [2, 32], strides = [1, 1]} : vector<2x96xf32> to vector<2x32xf32>
    %264 = vector.extract_strided_slice %254 {offsets = [0, 32], sizes = [2, 32], strides = [1, 1]} : vector<2x96xf32> to vector<2x32xf32>
    %265 = arith.addf %263, %264 : vector<2x32xf32>
    %266 = arith.negf %265 : vector<2x32xf32>
    %267 = math.exp %266 : vector<2x32xf32>
    %cst_82 = arith.constant 1.000000e+00 : f32
    %268 = vector.broadcast %cst_82 : f32 to vector<2x32xf32>
    %269 = arith.addf %268, %267 : vector<2x32xf32>
    %270 = arith.divf %268, %269 : vector<2x32xf32>
    %271 = vector.extract_strided_slice %251 {offsets = [0, 64], sizes = [2, 32], strides = [1, 1]} : vector<2x96xf32> to vector<2x32xf32>
    %272 = vector.extract_strided_slice %254 {offsets = [0, 64], sizes = [2, 32], strides = [1, 1]} : vector<2x96xf32> to vector<2x32xf32>
    %273 = arith.mulf %262, %272 : vector<2x32xf32>
    %274 = arith.addf %271, %273 : vector<2x32xf32>
    %275 = math.tanh %274 : vector<2x32xf32>
    %cst_83 = arith.constant 1.000000e+00 : f32
    %276 = vector.broadcast %cst_83 : f32 to vector<2x32xf32>
    %277 = arith.subf %276, %270 : vector<2x32xf32>
    %278 = arith.mulf %277, %275 : vector<2x32xf32>
    %279 = arith.mulf %270, %246 : vector<2x32xf32>
    %280 = arith.addf %278, %279 : vector<2x32xf32>
    %c0_84 = arith.constant 0 : index
    %c7_85 = arith.constant 7 : index
    %c0_86 = arith.constant 0 : index
    %281 = vector.load %arg8[%c0_84, %c7_85, %c0_86] : memref<2x8x32xf32, #tpu.memory_space<vmem>>, vector<2x1x32xf32>
    %282 = vector.shape_cast %281 : vector<2x1x32xf32> to vector<2x32xf32>
    %283 = vector.shape_cast %280 : vector<2x32xf32> to vector<2x1x32xf32>
    tpu.vector_store %arg8[%c0_84, %c7_85, %c0_86], %283 {strides = array<i32>} : memref<2x8x32xf32, #tpu.memory_space<vmem>>, vector<2x1x32xf32>,
    %c0_87 = arith.constant 0 : index
    %c0_88 = arith.constant 0 : index
    %c0_89 = arith.constant 0 : index
    %284 = vector.load %arg8[%c0_87, %c0_88, %c0_89] : memref<2x8x32xf32, #tpu.memory_space<vmem>>, vector<2x8x32xf32>
    %285 = vector.shape_cast %284 : vector<2x8x32xf32> to vector<16x32xf32>
    %c0_90 = arith.constant 0 : index
    %c0_91 = arith.constant 0 : index
    %286 = vector.load %arg3[%c0_90, %c0_91] : memref<32x2xf32, #tpu.memory_space<vmem>>, vector<32x2xf32>
    %cst_92 = arith.constant dense<0.000000e+00> : vector<16x2xf32>
    %287 = tpu.matmul %285, %286, %cst_92 {dimension_numbers = #tpu.dot_dimension_numbers<[1], [0], [0], [1], [0, 0, 1, 1], [], []>} : vector<16x32xf32>, vector<32x2xf32>, vector<16x2xf32> -> vector<16x2xf32>
    %c0_93 = arith.constant 0 : index
    %c0_94 = arith.constant 0 : index
    %288 = vector.load %arg6[%c0_93, %c0_94] : memref<1x2xf32, #tpu.memory_space<vmem>>, vector<1x2xf32>
    %289 = vector.broadcast %288 : vector<1x2xf32> to vector<16x2xf32>
    %290 = arith.addf %287, %289 : vector<16x2xf32>
    %291 = vector.shape_cast %290 : vector<16x2xf32> to vector<2x8x2xf32>
    %c0_95 = arith.constant 0 : index
    %c0_96 = arith.constant 0 : index
    %c0_97 = arith.constant 0 : index
    %292 = vector.load %arg7[%c0_95, %c0_96, %c0_97] : memref<2x8x2xf32, #tpu.memory_space<vmem>>, vector<2x8x2xf32>
    tpu.vector_store %arg7[%c0_95, %c0_96, %c0_97], %291 {strides = array<i32>} : memref<2x8x2xf32, #tpu.memory_space<vmem>>, vector<2x8x2xf32>,
    return
  }
}

</mosaic_0001>

<llo_original>
// kernel: logic_gru_forward.1
$region0: #{logic_gru_forward.1}
  #allocation0 [shape = 'u32[]', space=smem, size = 0x4, offset = 0x4, fixed_abs, tag = 'smem constant byte address 0x4 - core index']
  #allocation1 [shape = 'u32[72,128]{1,0:T(1,128)}', space=vmem, size = 0x9000, scoped, tag = 'internal scratch']
  #allocation2 [shape = 'f32[2,8,96]{2,1,0:T(8,128)}', space=vmem, size = 0x2000, scoped, tag = 'scratch operand']
  %s0 = inlined_call_operand.vmem [shape: f32[2,8,4], index: 0, kind: input, shape index: {}]
  %s1 = inlined_call_operand.vmem [shape: f32[4,96], index: 1, kind: input, shape index: {}]
  %s2 = inlined_call_operand.vmem [shape: f32[32,96], index: 2, kind: input, shape index: {}]
  %s3 = inlined_call_operand.vmem [shape: f32[32,2], index: 3, kind: input, shape index: {}]
  %s4 = inlined_call_operand.vmem [shape: f32[1,96], index: 4, kind: input, shape index: {}]
  %s5 = inlined_call_operand.vmem [shape: f32[1,96], index: 5, kind: input, shape index: {}]
  %s6 = inlined_call_operand.vmem [shape: f32[1,2], index: 6, kind: input, shape index: {}]
  %s7 = inlined_call_operand.vmem [shape: f32[2,8,2], index: 7, kind: output, shape index: {0}]
  %s8 = inlined_call_operand.hbm [shape: f32[2,8,32], index: 8, kind: output, shape index: {1}]
  %9 = xla_tuple %s7, %s8
  %s10 = sld [smem:[#allocation0]]
  $region46: #{logic_gru_forward.1} parent=0
    _
  %s12 = ssub.s32 1, %s10
  %s13 = scalar_select 0, %s12, %s10
  $region1: #{logic_gru_forward.1} parent=0
    #allocation3 [shape = 'u8[8192]{0}', space=vmem, size = 0x2000, scoped, tag = 'output window, operand 1, single buffered']
    #allocation4 [shape = 's32[1]{0}', space=sflag, size = 0x4, scoped, tag = 'scoped memory for logic_gru_forward.1']
    %14 = vsyncpa [#allocation4], 0
    // Predicated region
    $region2: #{logic_gru_forward.1} parent=1 // pred_check
      _
    $region3: #{logic_gru_forward.1} parent=1 // pred_check_branch
      %16 = sbr.rel (0) target = $region5
    $region4: #{logic_gru_forward.1} parent=1 // pred_region
      _
    $region5: #{logic_gru_forward.1} parent=1 // pred_fallthru
      _
    // Predicated region
    $region6: #{logic_gru_forward.1} parent=1 // pred_check
      _
    $region7: #{logic_gru_forward.1} parent=1 // pred_check_branch
      %18 = sbr.rel (0) target = $region9
    $region8: #{logic_gru_forward.1} parent=1 // pred_region
      _
    $region9: #{logic_gru_forward.1} parent=1 // pred_fallthru
      _
    // Predicated region
    $region10: #{logic_gru_forward.1} parent=1 // pred_check
      _
    $region11: #{logic_gru_forward.1} parent=1 // pred_check_branch
      %20 = sbr.rel (0) target = $region13
    $region12: #{logic_gru_forward.1} parent=1 // pred_region
      _
    $region13: #{logic_gru_forward.1} parent=1 // pred_fallthru
      _
    // Predicated region
    $region14: #{logic_gru_forward.1} parent=1 // pred_check
      _
    $region15: #{logic_gru_forward.1} parent=1 // pred_check_branch
      %22 = sbr.rel (0) target = $region17
    $region16: #{logic_gru_forward.1} parent=1 // pred_region
      _
    $region17: #{logic_gru_forward.1} parent=1 // pred_fallthru
      _
    // Predicated region
    $region18: #{logic_gru_forward.1} parent=1 // pred_check
      _
    $region19: #{logic_gru_forward.1} parent=1 // pred_check_branch
      %24 = sbr.rel (0) target = $region21
    $region20: #{logic_gru_forward.1} parent=1 // pred_region
      _
    $region21: #{logic_gru_forward.1} parent=1 // pred_fallthru
      _
    // Predicated region
    $region22: #{logic_gru_forward.1} parent=1 // pred_check
      _
    $region23: #{logic_gru_forward.1} parent=1 // pred_check_branch
      %26 = sbr.rel (0) target = $region25
    $region24: #{logic_gru_forward.1} parent=1 // pred_region
      _
    $region25: #{logic_gru_forward.1} parent=1 // pred_fallthru
      _
    // Predicated region
    $region26: #{logic_gru_forward.1} parent=1 // pred_check
      _
    $region27: #{logic_gru_forward.1} parent=1 // pred_check_branch
      %28 = sbr.rel (0) target = $region29
    $region28: #{logic_gru_forward.1} parent=1 // pred_region
      _
    $region29: #{logic_gru_forward.1} parent=1 // pred_fallthru
      _
    %v29 = vld [vmem:[%s0] sm:$0xff]
    %v30 = vld [vmem:[%s0 + $0x8] sm:$0xff]
    %v31 = vld [vmem:[%s1] sm:$0xf]
    %v32 = vld [vmem:[%s4] sm:$0x1]
    %v34 = vperm.slane %v32, 0
    %vm36 = vcmask 31744
    %v38 = vsel %vm36, %v29, 0
    %v41 = vsel %vm36, %v30, 0
    %vm43 = vcmask 1043456
    %v45 = vsel %vm43, %v31, 0
    %47 = vmatpush.msra.mxu0 0.0
    %48 = vmatpush.msra.mxu0 0.0
    %49 = vmatpush.msra.mxu0 0.0
    %50 = vmatpush.msra.mxu0 0.0
    %51 = vmatpush.msra.mxu0 0.0
    %52 = vmatpush.msra.mxu0 0.0
    %53 = vmatpush.msra.mxu0 0.0
    %54 = vmatpush.msra.mxu0 0.0
    %55 = vmatpush.msra.mxu0 0.0
    %56 = vmatpush.msra.mxu0 0.0
    %57 = vmatpush.msra.mxu0 0.0
    %58 = vmatpush.msra.mxu0 0.0
    %59 = vmatpush.msra.mxu0 0.0
    %60 = vmatpush.msra.mxu0 0.0
    %61 = vmatpush.msra.mxu0 0.0
    %62 = vmatpush.msra.mxu0 %v45
    %63 = vmatmul.f32.gmra.mxu0 %v38
    %v64 = vpop.f32.mrf.mxu0
    %v65 = vadd.f32 %v34, %v64
    %66 = vmatmul.f32.gmra.mxu0 %v41
    %v67 = vpop.f32.mrf.mxu0
    %v68 = vadd.f32 %v34, %v67
    %69 = vdwg.mxu0
    %vm70 = vcmask 785408
    %71 = vst.msk [vmem:[#allocation2] sm:$0xff] %vm70, %v65
    %72 = vst.msk [vmem:[#allocation2 + $0x8] sm:$0xff] %vm70, %v68
    %v73 = vld [vmem:[%s2] sm:$0xff]
    %v74 = vld [vmem:[%s2 + $0x8] sm:$0xff]
    %v75 = vld [vmem:[%s2 + $0x10] sm:$0xff]
    %v76 = vld [vmem:[%s2 + $0x18] sm:$0xff]
    %v77 = vld [vmem:[%s5] sm:$0x1]
    %v78 = vld [vmem:[#allocation2] sm:$0x1]
    %v79 = vld [vmem:[#allocation2 + $0x8] sm:$0x1]
    %v81 = vperm.slane %v77, 0
    %vm83 = vcmask 261120
    %v85 = vsel %vm83, 0.0, 0
    %87 = vmatpush.msra.mxu0 0.0
    %88 = vmatpush.msra.mxu0 0.0
    %89 = vmatpush.msra.mxu0 0.0
    %90 = vmatpush.msra.mxu0 0.0
    %91 = vmatpush.msra.mxu0 0.0
    %92 = vmatpush.msra.mxu0 0.0
    %93 = vmatpush.msra.mxu0 0.0
    %94 = vmatpush.msra.mxu0 0.0
    %95 = vmatpush.msra.mxu0 0.0
    %96 = vmatpush.msra.mxu0 0.0
    %97 = vmatpush.msra.mxu0 0.0
    %98 = vmatpush.msra.mxu0 0.0
    %99 = vmatpush.msra.mxu0 %v76
    %100 = vmatpush.msra.mxu0 %v75
    %101 = vmatpush.msra.mxu0 %v74
    %102 = vmatpush.msra.mxu0 %v73
    %103 = vmatmul.f32.gmra.mxu0 %v85
    %v104 = vpop.f32.mrf.mxu0
    %v105 = vadd.f32 %v81, %v104
    %106 = vdwg.mxu0
    %v108 = vrot.slane %v105, 1
    %v111 = vadd.f32 %v78, %v105
    %v112 = vadd.f32 %v79, %v108
    %v113 = vxor.u32 %v111, 2147483648
    %v114 = vxor.u32 %v112, 2147483648
    %v115 = vmul.f32 %v113, 1.442695
    %v116 = vpow.pop %v115
    %v117 = vmul.f32 %v114, 1.442695
    %v118 = vpow.pop %v117
    %v119 = vadd.f32 %v116, 1.0
    %v120 = vadd.f32 %v118, 1.0
    %v121 = vrcp.pop %v119
    %v122 = vmul.f32 %v119, %v121
    %v123 = vsub.f32 1.0, %v122
    %v124 = vmul.f32 %v121, %v123
    %v125 = vadd.f32 %v121, %v124
    %vm126 = vweird.f32 %v119
    %vm127 = vweird.f32 %v121
    %vm128 = vmor %vm126, %vm127
    %v129 = vsel %vm128, %v121, %v125
    %v130 = vand.u32 2147483647, %v119
    %vm131 = vcmp.eq.f32.partialorder %v130, 8.507059e+37
    %v132 = vand.u32 %v119, 2147483648
    %v133 = vor.u32 1.1754944e-38, %v132
    %v134 = vsel %vm131, %v133, %v129
    %v135 = vmul.f32 1.0, %v134
    %v136 = vrcp.pop %v120
    %v137 = vmul.f32 %v120, %v136
    %v138 = vsub.f32 1.0, %v137
    %v139 = vmul.f32 %v136, %v138
    %v140 = vadd.f32 %v136, %v139
    %vm141 = vweird.f32 %v120
    %vm142 = vweird.f32 %v136
    %vm143 = vmor %vm141, %vm142
    %v144 = vsel %vm143, %v136, %v140
    %v145 = vand.u32 2147483647, %v120
    %vm146 = vcmp.eq.f32.partialorder %v145, 8.507059e+37
    %v147 = vand.u32 %v120, 2147483648
    %v148 = vor.u32 1.1754944e-38, %v147
    %v149 = vsel %vm146, %v148, %v144
    %v150 = vmul.f32 1.0, %v149
    %151 = vrot.lane.b32.xlu0 %v105, 64
    %v152 = vpop.permute.xlu0 %151
    %153 = vrot.lane.b32.xlu0 %v108, 64
    %v154 = vpop.permute.xlu0 %153
    %v157 = vmul.f32 %v135, %v152
    %v158 = vmul.f32 %v150, %v154
    %161 = vrot.lane.b32.xlu0 %v157, 64
    %v162 = vpop.permute.xlu0 %161
    %163 = vrot.lane.b32.xlu0 %v158, 64
    %v164 = vpop.permute.xlu0 %163
    %v167 = vadd.f32 %v78, %v162
    %v168 = vadd.f32 %v79, %v164
    %v169 = vtanh.pop %v167
    %v170 = vtanh.pop %v168
    %v171 = vsub.f32 1.0, %v135
    %v172 = vsub.f32 1.0, %v150
    %175 = vrot.lane.b32.xlu0 %v169, 96
    %v176 = vpop.permute.xlu0 %175
    %177 = vrot.lane.b32.xlu0 %v170, 96
    %v178 = vpop.permute.xlu0 %177
    %v181 = vmul.f32 %v171, %v176
    %v182 = vmul.f32 %v172, %v178
    %v183 = vmul.f32 %v135, 0.0
    %v184 = vmul.f32 %v150, 0.0
    %v185 = vadd.f32 %v181, %v183
    %v186 = vadd.f32 %v182, %v184
    %189 = vrot.lane.b32.xlu0 %v185, 96
    %v190 = vpop.permute.xlu0 %189
    %191 = vrot.lane.b32.xlu0 %v186, 96
    %v192 = vpop.permute.xlu0 %191
    %vm195 = vcmask 253952
    %196 = vst.msk [vmem:[#allocation3] sm:$0x1] %vm195, %v190
    %197 = vst.msk [vmem:[#allocation3 + $0x8] sm:$0x1] %vm195, %v192
    %v198 = vld [vmem:[#allocation2 + $0x1] sm:$0x1]
    %v199 = vld [vmem:[#allocation2 + $0x9] sm:$0x1]
    %v200 = vrot.slane %v186, 7
    %vm201 = vcmask 1041409
    %v202 = vsel %vm201, %v200, %v185
    %203 = vrot.lane.b32.xlu0 %v202, 96
    %v204 = vpop.permute.xlu0 %203
    %v205 = vsel %vm83, %v204, 0
    %207 = vmatpush.msra.mxu0 0.0
    %208 = vmatpush.msra.mxu0 0.0
    %209 = vmatpush.msra.mxu0 0.0
    %210 = vmatpush.msra.mxu0 0.0
    %211 = vmatpush.msra.mxu0 0.0
    %212 = vmatpush.msra.mxu0 0.0
    %213 = vmatpush.msra.mxu0 0.0
    %214 = vmatpush.msra.mxu0 0.0
    %215 = vmatpush.msra.mxu0 0.0
    %216 = vmatpush.msra.mxu0 0.0
    %217 = vmatpush.msra.mxu0 0.0
    %218 = vmatpush.msra.mxu0 0.0
    %219 = vmatpush.msra.mxu0 %v76
    %220 = vmatpush.msra.mxu0 %v75
    %221 = vmatpush.msra.mxu0 %v74
    %222 = vmatpush.msra.mxu0 %v73
    %223 = vmatmul.f32.gmra.mxu0 %v205
    %v224 = vpop.f32.mrf.mxu0
    %v225 = vadd.f32 %v81, %v224
    %226 = vdwg.mxu0
    %v228 = vrot.slane %v225, 1
    %v231 = vadd.f32 %v198, %v225
    %v232 = vadd.f32 %v199, %v228
    %v233 = vxor.u32 %v231, 2147483648
    %v234 = vxor.u32 %v232, 2147483648
    %v235 = vmul.f32 %v233, 1.442695
    %v236 = vpow.pop %v235
    %v237 = vmul.f32 %v234, 1.442695
    %v238 = vpow.pop %v237
    %v239 = vadd.f32 %v236, 1.0
    %v240 = vadd.f32 %v238, 1.0
    %v241 = vrcp.pop %v239
    %v242 = vmul.f32 %v239, %v241
    %v243 = vsub.f32 1.0, %v242
    %v244 = vmul.f32 %v241, %v243
    %v245 = vadd.f32 %v241, %v244
    %vm246 = vweird.f32 %v239
    %vm247 = vweird.f32 %v241
    %vm248 = vmor %vm246, %vm247
    %v249 = vsel %vm248, %v241, %v245
    %v250 = vand.u32 2147483647, %v239
    %vm251 = vcmp.eq.f32.partialorder %v250, 8.507059e+37
    %v252 = vand.u32 %v239, 2147483648
    %v253 = vor.u32 1.1754944e-38, %v252
    %v254 = vsel %vm251, %v253, %v249
    %v255 = vmul.f32 1.0, %v254
    %v256 = vrcp.pop %v240
    %v257 = vmul.f32 %v240, %v256
    %v258 = vsub.f32 1.0, %v257
    %v259 = vmul.f32 %v256, %v258
    %v260 = vadd.f32 %v256, %v259
    %vm261 = vweird.f32 %v240
    %vm262 = vweird.f32 %v256
    %vm263 = vmor %vm261, %vm262
    %v264 = vsel %vm263, %v256, %v260
    %v265 = vand.u32 2147483647, %v240
    %vm266 = vcmp.eq.f32.partialorder %v265, 8.507059e+37
    %v267 = vand.u32 %v240, 2147483648
    %v268 = vor.u32 1.1754944e-38, %v267
    %v269 = vsel %vm266, %v268, %v264
    %v270 = vmul.f32 1.0, %v269
    %271 = vrot.lane.b32.xlu0 %v225, 64
    %v272 = vpop.permute.xlu0 %271
    %273 = vrot.lane.b32.xlu0 %v228, 64
    %v274 = vpop.permute.xlu0 %273
    %v277 = vmul.f32 %v255, %v272
    %v278 = vmul.f32 %v270, %v274
    %281 = vrot.lane.b32.xlu0 %v277, 64
    %v282 = vpop.permute.xlu0 %281
    %283 = vrot.lane.b32.xlu0 %v278, 64
    %v284 = vpop.permute.xlu0 %283
    %v287 = vadd.f32 %v198, %v282
    %v288 = vadd.f32 %v199, %v284
    %v289 = vtanh.pop %v287
    %v290 = vtanh.pop %v288
    %v291 = vsub.f32 1.0, %v255
    %v292 = vsub.f32 1.0, %v270
    %295 = vrot.lane.b32.xlu0 %v289, 96
    %v296 = vpop.permute.xlu0 %295
    %297 = vrot.lane.b32.xlu0 %v290, 96
    %v298 = vpop.permute.xlu0 %297
    %v301 = vmul.f32 %v291, %v296
    %v302 = vmul.f32 %v292, %v298
    %v303 = vmul.f32 %v255, %v185
    %v304 = vmul.f32 %v270, %v186
    %v305 = vadd.f32 %v301, %v303
    %v306 = vadd.f32 %v302, %v304
    %309 = vrot.lane.b32.xlu0 %v305, 96
    %v310 = vpop.permute.xlu0 %309
    %311 = vrot.lane.b32.xlu0 %v306, 96
    %v312 = vpop.permute.xlu0 %311
    %315 = vst.msk [vmem:[#allocation3 + $0x1] sm:$0x1] %vm195, %v310
    %316 = vst.msk [vmem:[#allocation3 + $0x9] sm:$0x1] %vm195, %v312
    %v317 = vld [vmem:[#allocation2 + $0x2] sm:$0x1]
    %v318 = vld [vmem:[#allocation2 + $0xa] sm:$0x1]
    %v319 = vrot.slane %v306, 7
    %v320 = vsel %vm201, %v319, %v305
    %321 = vrot.lane.b32.xlu0 %v320, 96
    %v322 = vpop.permute.xlu0 %321
    %v323 = vsel %vm83, %v322, 0
    %325 = vmatpush.msra.mxu0 0.0
    %326 = vmatpush.msra.mxu0 0.0
    %327 = vmatpush.msra.mxu0 0.0
    %328 = vmatpush.msra.mxu0 0.0
    %329 = vmatpush.msra.mxu0 0.0
    %330 = vmatpush.msra.mxu0 0.0
    %331 = vmatpush.msra.mxu0 0.0
    %332 = vmatpush.msra.mxu0 0.0
    %333 = vmatpush.msra.mxu0 0.0
    %334 = vmatpush.msra.mxu0 0.0
    %335 = vmatpush.msra.mxu0 0.0
    %336 = vmatpush.msra.mxu0 0.0
    %337 = vmatpush.msra.mxu0 %v76
    %338 = vmatpush.msra.mxu0 %v75
    %339 = vmatpush.msra.mxu0 %v74
    %340 = vmatpush.msra.mxu0 %v73
    %341 = vmatmul.f32.gmra.mxu0 %v323
    %v342 = vpop.f32.mrf.mxu0
    %v343 = vadd.f32 %v81, %v342
    %344 = vdwg.mxu0
    %v346 = vrot.slane %v343, 1
    %v349 = vadd.f32 %v317, %v343
    %v350 = vadd.f32 %v318, %v346
    %v351 = vxor.u32 %v349, 2147483648
    %v352 = vxor.u32 %v350, 2147483648
    %v353 = vmul.f32 %v351, 1.442695
    %v354 = vpow.pop %v353
    %v355 = vmul.f32 %v352, 1.442695
    %v356 = vpow.pop %v355
    %v357 = vadd.f32 %v354, 1.0
    %v358 = vadd.f32 %v356, 1.0
    %v359 = vrcp.pop %v357
    %v360 = vmul.f32 %v357, %v359
    %v361 = vsub.f32 1.0, %v360
    %v362 = vmul.f32 %v359, %v361
    %v363 = vadd.f32 %v359, %v362
    %vm364 = vweird.f32 %v357
    %vm365 = vweird.f32 %v359
    %vm366 = vmor %vm364, %vm365
    %v367 = vsel %vm366, %v359, %v363
    %v368 = vand.u32 2147483647, %v357
    %vm369 = vcmp.eq.f32.partialorder %v368, 8.507059e+37
    %v370 = vand.u32 %v357, 2147483648
    %v371 = vor.u32 1.1754944e-38, %v370
    %v372 = vsel %vm369, %v371, %v367
    %v373 = vmul.f32 1.0, %v372
    %v374 = vrcp.pop %v358
    %v375 = vmul.f32 %v358, %v374
    %v376 = vsub.f32 1.0, %v375
    %v377 = vmul.f32 %v374, %v376
    %v378 = vadd.f32 %v374, %v377
    %vm379 = vweird.f32 %v358
    %vm380 = vweird.f32 %v374
    %vm381 = vmor %vm379, %vm380
    %v382 = vsel %vm381, %v374, %v378
    %v383 = vand.u32 2147483647, %v358
    %vm384 = vcmp.eq.f32.partialorder %v383, 8.507059e+37
    %v385 = vand.u32 %v358, 2147483648
    %v386 = vor.u32 1.1754944e-38, %v385
    %v387 = vsel %vm384, %v386, %v382
    %v388 = vmul.f32 1.0, %v387
    %389 = vrot.lane.b32.xlu0 %v343, 64
    %v390 = vpop.permute.xlu0 %389
    %391 = vrot.lane.b32.xlu0 %v346, 64
    %v392 = vpop.permute.xlu0 %391
    %v395 = vmul.f32 %v373, %v390
    %v396 = vmul.f32 %v388, %v392
    %399 = vrot.lane.b32.xlu0 %v395, 64
    %v400 = vpop.permute.xlu0 %399
    %401 = vrot.lane.b32.xlu0 %v396, 64
    %v402 = vpop.permute.xlu0 %401
    %v405 = vadd.f32 %v317, %v400
    %v406 = vadd.f32 %v318, %v402
    %v407 = vtanh.pop %v405
    %v408 = vtanh.pop %v406
    %v409 = vsub.f32 1.0, %v373
    %v410 = vsub.f32 1.0, %v388
    %413 = vrot.lane.b32.xlu0 %v407, 96
    %v414 = vpop.permute.xlu0 %413
    %415 = vrot.lane.b32.xlu0 %v408, 96
    %v416 = vpop.permute.xlu0 %415
    %v419 = vmul.f32 %v409, %v414
    %v420 = vmul.f32 %v410, %v416
    %v421 = vmul.f32 %v373, %v305
    %v422 = vmul.f32 %v388, %v306
    %v423 = vadd.f32 %v419, %v421
    %v424 = vadd.f32 %v420, %v422
    %427 = vrot.lane.b32.xlu0 %v423, 96
    %v428 = vpop.permute.xlu0 %427
    %429 = vrot.lane.b32.xlu0 %v424, 96
    %v430 = vpop.permute.xlu0 %429
    %433 = vst.msk [vmem:[#allocation3 + $0x2] sm:$0x1] %vm195, %v428
    %434 = vst.msk [vmem:[#allocation3 + $0xa] sm:$0x1] %vm195, %v430
    %v435 = vld [vmem:[#allocation2 + $0x3] sm:$0x1]
    %v436 = vld [vmem:[#allocation2 + $0xb] sm:$0x1]
    %v437 = vrot.slane %v424, 7
    %v438 = vsel %vm201, %v437, %v423
    %439 = vrot.lane.b32.xlu0 %v438, 96
    %v440 = vpop.permute.xlu0 %439
    %v441 = vsel %vm83, %v440, 0
    %443 = vmatpush.msra.mxu0 0.0
    %444 = vmatpush.msra.mxu0 0.0
    %445 = vmatpush.msra.mxu0 0.0
    %446 = vmatpush.msra.mxu0 0.0
    %447 = vmatpush.msra.mxu0 0.0
    %448 = vmatpush.msra.mxu0 0.0
    %449 = vmatpush.msra.mxu0 0.0
    %450 = vmatpush.msra.mxu0 0.0
    %451 = vmatpush.msra.mxu0 0.0
    %452 = vmatpush.msra.mxu0 0.0
    %453 = vmatpush.msra.mxu0 0.0
    %454 = vmatpush.msra.mxu0 0.0
    %455 = vmatpush.msra.mxu0 %v76
    %456 = vmatpush.msra.mxu0 %v75
    %457 = vmatpush.msra.mxu0 %v74
    %458 = vmatpush.msra.mxu0 %v73
    %459 = vmatmul.f32.gmra.mxu0 %v441
    %v460 = vpop.f32.mrf.mxu0
    %v461 = vadd.f32 %v81, %v460
    %462 = vdwg.mxu0
    %v464 = vrot.slane %v461, 1
    %v467 = vadd.f32 %v435, %v461
    %v468 = vadd.f32 %v436, %v464
    %v469 = vxor.u32 %v467, 2147483648
    %v470 = vxor.u32 %v468, 2147483648
    %v471 = vmul.f32 %v469, 1.442695
    %v472 = vpow.pop %v471
    %v473 = vmul.f32 %v470, 1.442695
    %v474 = vpow.pop %v473
    %v475 = vadd.f32 %v472, 1.0
    %v476 = vadd.f32 %v474, 1.0
    %v477 = vrcp.pop %v475
    %v478 = vmul.f32 %v475, %v477
    %v479 = vsub.f32 1.0, %v478
    %v480 = vmul.f32 %v477, %v479
    %v481 = vadd.f32 %v477, %v480
    %vm482 = vweird.f32 %v475
    %vm483 = vweird.f32 %v477
    %vm484 = vmor %vm482, %vm483
    %v485 = vsel %vm484, %v477, %v481
    %v486 = vand.u32 2147483647, %v475
    %vm487 = vcmp.eq.f32.partialorder %v486, 8.507059e+37
    %v488 = vand.u32 %v475, 2147483648
    %v489 = vor.u32 1.1754944e-38, %v488
    %v490 = vsel %vm487, %v489, %v485
    %v491 = vmul.f32 1.0, %v490
    %v492 = vrcp.pop %v476
    %v493 = vmul.f32 %v476, %v492
    %v494 = vsub.f32 1.0, %v493
    %v495 = vmul.f32 %v492, %v494
    %v496 = vadd.f32 %v492, %v495
    %vm497 = vweird.f32 %v476
    %vm498 = vweird.f32 %v492
    %vm499 = vmor %vm497, %vm498
    %v500 = vsel %vm499, %v492, %v496
    %v501 = vand.u32 2147483647, %v476
    %vm502 = vcmp.eq.f32.partialorder %v501, 8.507059e+37
    %v503 = vand.u32 %v476, 2147483648
    %v504 = vor.u32 1.1754944e-38, %v503
    %v505 = vsel %vm502, %v504, %v500
    %v506 = vmul.f32 1.0, %v505
    %507 = vrot.lane.b32.xlu0 %v461, 64
    %v508 = vpop.permute.xlu0 %507
    %509 = vrot.lane.b32.xlu0 %v464, 64
    %v510 = vpop.permute.xlu0 %509
    %v513 = vmul.f32 %v491, %v508
    %v514 = vmul.f32 %v506, %v510
    %517 = vrot.lane.b32.xlu0 %v513, 64
    %v518 = vpop.permute.xlu0 %517
    %519 = vrot.lane.b32.xlu0 %v514, 64
    %v520 = vpop.permute.xlu0 %519
    %v523 = vadd.f32 %v435, %v518
    %v524 = vadd.f32 %v436, %v520
    %v525 = vtanh.pop %v523
    %v526 = vtanh.pop %v524
    %v527 = vsub.f32 1.0, %v491
    %v528 = vsub.f32 1.0, %v506
    %531 = vrot.lane.b32.xlu0 %v525, 96
    %v532 = vpop.permute.xlu0 %531
    %533 = vrot.lane.b32.xlu0 %v526, 96
    %v534 = vpop.permute.xlu0 %533
    %v537 = vmul.f32 %v527, %v532
    %v538 = vmul.f32 %v528, %v534
    %v539 = vmul.f32 %v491, %v423
    %v540 = vmul.f32 %v506, %v424
    %v541 = vadd.f32 %v537, %v539
    %v542 = vadd.f32 %v538, %v540
    %545 = vrot.lane.b32.xlu0 %v541, 96
    %v546 = vpop.permute.xlu0 %545
    %547 = vrot.lane.b32.xlu0 %v542, 96
    %v548 = vpop.permute.xlu0 %547
    %551 = vst.msk [vmem:[#allocation3 + $0x3] sm:$0x1] %vm195, %v546
    %552 = vst.msk [vmem:[#allocation3 + $0xb] sm:$0x1] %vm195, %v548
    %v553 = vld [vmem:[#allocation2 + $0x4] sm:$0x1]
    %v554 = vld [vmem:[#allocation2 + $0xc] sm:$0x1]
    %v555 = vrot.slane %v542, 7
    %v556 = vsel %vm201, %v555, %v541
    %557 = vrot.lane.b32.xlu0 %v556, 96
    %v558 = vpop.permute.xlu0 %557
    %v559 = vsel %vm83, %v558, 0
    %561 = vmatpush.msra.mxu0 0.0
    %562 = vmatpush.msra.mxu0 0.0
    %563 = vmatpush.msra.mxu0 0.0
    %564 = vmatpush.msra.mxu0 0.0
    %565 = vmatpush.msra.mxu0 0.0
    %566 = vmatpush.msra.mxu0 0.0
    %567 = vmatpush.msra.mxu0 0.0
    %568 = vmatpush.msra.mxu0 0.0
    %569 = vmatpush.msra.mxu0 0.0
    %570 = vmatpush.msra.mxu0 0.0
    %571 = vmatpush.msra.mxu0 0.0
    %572 = vmatpush.msra.mxu0 0.0
    %573 = vmatpush.msra.mxu0 %v76
    %574 = vmatpush.msra.mxu0 %v75
    %575 = vmatpush.msra.mxu0 %v74
    %576 = vmatpush.msra.mxu0 %v73
    %577 = vmatmul.f32.gmra.mxu0 %v559
    %v578 = vpop.f32.mrf.mxu0
    %v579 = vadd.f32 %v81, %v578
    %580 = vdwg.mxu0
    %v582 = vrot.slane %v579, 1
    %v585 = vadd.f32 %v553, %v579
    %v586 = vadd.f32 %v554, %v582
    %v587 = vxor.u32 %v585, 2147483648
    %v588 = vxor.u32 %v586, 2147483648
    %v589 = vmul.f32 %v587, 1.442695
    %v590 = vpow.pop %v589
    %v591 = vmul.f32 %v588, 1.442695
    %v592 = vpow.pop %v591
    %v593 = vadd.f32 %v590, 1.0
    %v594 = vadd.f32 %v592, 1.0
    %v595 = vrcp.pop %v593
    %v596 = vmul.f32 %v593, %v595
    %v597 = vsub.f32 1.0, %v596
    %v598 = vmul.f32 %v595, %v597
    %v599 = vadd.f32 %v595, %v598
    %vm600 = vweird.f32 %v593
    %vm601 = vweird.f32 %v595
    %vm602 = vmor %vm600, %vm601
    %v603 = vsel %vm602, %v595, %v599
    %v604 = vand.u32 2147483647, %v593
    %vm605 = vcmp.eq.f32.partialorder %v604, 8.507059e+37
    %v606 = vand.u32 %v593, 2147483648
    %v607 = vor.u32 1.1754944e-38, %v606
    %v608 = vsel %vm605, %v607, %v603
    %v609 = vmul.f32 1.0, %v608
    %v610 = vrcp.pop %v594
    %v611 = vmul.f32 %v594, %v610
    %v612 = vsub.f32 1.0, %v611
    %v613 = vmul.f32 %v610, %v612
    %v614 = vadd.f32 %v610, %v613
    %vm615 = vweird.f32 %v594
    %vm616 = vweird.f32 %v610
    %vm617 = vmor %vm615, %vm616
    %v618 = vsel %vm617, %v610, %v614
    %v619 = vand.u32 2147483647, %v594
    %vm620 = vcmp.eq.f32.partialorder %v619, 8.507059e+37
    %v621 = vand.u32 %v594, 2147483648
    %v622 = vor.u32 1.1754944e-38, %v621
    %v623 = vsel %vm620, %v622, %v618
    %v624 = vmul.f32 1.0, %v623
    %625 = vrot.lane.b32.xlu0 %v579, 64
    %v626 = vpop.permute.xlu0 %625
    %627 = vrot.lane.b32.xlu0 %v582, 64
    %v628 = vpop.permute.xlu0 %627
    %v631 = vmul.f32 %v609, %v626
    %v632 = vmul.f32 %v624, %v628
    %635 = vrot.lane.b32.xlu0 %v631, 64
    %v636 = vpop.permute.xlu0 %635
    %637 = vrot.lane.b32.xlu0 %v632, 64
    %v638 = vpop.permute.xlu0 %637
    %v641 = vadd.f32 %v553, %v636
    %v642 = vadd.f32 %v554, %v638
    %v643 = vtanh.pop %v641
    %v644 = vtanh.pop %v642
    %v645 = vsub.f32 1.0, %v609
    %v646 = vsub.f32 1.0, %v624
    %649 = vrot.lane.b32.xlu0 %v643, 96
    %v650 = vpop.permute.xlu0 %649
    %651 = vrot.lane.b32.xlu0 %v644, 96
    %v652 = vpop.permute.xlu0 %651
    %v655 = vmul.f32 %v645, %v650
    %v656 = vmul.f32 %v646, %v652
    %v657 = vmul.f32 %v609, %v541
    %v658 = vmul.f32 %v624, %v542
    %v659 = vadd.f32 %v655, %v657
    %v660 = vadd.f32 %v656, %v658
    %663 = vrot.lane.b32.xlu0 %v659, 96
    %v664 = vpop.permute.xlu0 %663
    %665 = vrot.lane.b32.xlu0 %v660, 96
    %v666 = vpop.permute.xlu0 %665
    %669 = vst.msk [vmem:[#allocation3 + $0x4] sm:$0x1] %vm195, %v664
    %670 = vst.msk [vmem:[#allocation3 + $0xc] sm:$0x1] %vm195, %v666
    %v671 = vld [vmem:[#allocation2 + $0x5] sm:$0x1]
    %v672 = vld [vmem:[#allocation2 + $0xd] sm:$0x1]
    %v673 = vrot.slane %v660, 7
    %v674 = vsel %vm201, %v673, %v659
    %675 = vrot.lane.b32.xlu0 %v674, 96
    %v676 = vpop.permute.xlu0 %675
    %v677 = vsel %vm83, %v676, 0
    %679 = vmatpush.msra.mxu0 0.0
    %680 = vmatpush.msra.mxu0 0.0
    %681 = vmatpush.msra.mxu0 0.0
    %682 = vmatpush.msra.mxu0 0.0
    %683 = vmatpush.msra.mxu0 0.0
    %684 = vmatpush.msra.mxu0 0.0
    %685 = vmatpush.msra.mxu0 0.0
    %686 = vmatpush.msra.mxu0 0.0
    %687 = vmatpush.msra.mxu0 0.0
    %688 = vmatpush.msra.mxu0 0.0
    %689 = vmatpush.msra.mxu0 0.0
    %690 = vmatpush.msra.mxu0 0.0
    %691 = vmatpush.msra.mxu0 %v76
    %692 = vmatpush.msra.mxu0 %v75
    %693 = vmatpush.msra.mxu0 %v74
    %694 = vmatpush.msra.mxu0 %v73
    %695 = vmatmul.f32.gmra.mxu0 %v677
    %v696 = vpop.f32.mrf.mxu0
    %v697 = vadd.f32 %v81, %v696
    %698 = vdwg.mxu0
    %v700 = vrot.slane %v697, 1
    %v703 = vadd.f32 %v671, %v697
    %v704 = vadd.f32 %v672, %v700
    %v705 = vxor.u32 %v703, 2147483648
    %v706 = vxor.u32 %v704, 2147483648
    %v707 = vmul.f32 %v705, 1.442695
    %v708 = vpow.pop %v707
    %v709 = vmul.f32 %v706, 1.442695
    %v710 = vpow.pop %v709
    %v711 = vadd.f32 %v708, 1.0
    %v712 = vadd.f32 %v710, 1.0
    %v713 = vrcp.pop %v711
    %v714 = vmul.f32 %v711, %v713
    %v715 = vsub.f32 1.0, %v714
    %v716 = vmul.f32 %v713, %v715
    %v717 = vadd.f32 %v713, %v716
    %vm718 = vweird.f32 %v711
    %vm719 = vweird.f32 %v713
    %vm720 = vmor %vm718, %vm719
    %v721 = vsel %vm720, %v713, %v717
    %v722 = vand.u32 2147483647, %v711
    %vm723 = vcmp.eq.f32.partialorder %v722, 8.507059e+37
    %v724 = vand.u32 %v711, 2147483648
    %v725 = vor.u32 1.1754944e-38, %v724
    %v726 = vsel %vm723, %v725, %v721
    %v727 = vmul.f32 1.0, %v726
    %v728 = vrcp.pop %v712
    %v729 = vmul.f32 %v712, %v728
    %v730 = vsub.f32 1.0, %v729
    %v731 = vmul.f32 %v728, %v730
    %v732 = vadd.f32 %v728, %v731
    %vm733 = vweird.f32 %v712
    %vm734 = vweird.f32 %v728
    %vm735 = vmor %vm733, %vm734
    %v736 = vsel %vm735, %v728, %v732
    %v737 = vand.u32 2147483647, %v712
    %vm738 = vcmp.eq.f32.partialorder %v737, 8.507059e+37
    %v739 = vand.u32 %v712, 2147483648
    %v740 = vor.u32 1.1754944e-38, %v739
    %v741 = vsel %vm738, %v740, %v736
    %v742 = vmul.f32 1.0, %v741
    %743 = vrot.lane.b32.xlu0 %v697, 64
    %v744 = vpop.permute.xlu0 %743
    %745 = vrot.lane.b32.xlu0 %v700, 64
    %v746 = vpop.permute.xlu0 %745
    %v749 = vmul.f32 %v727, %v744
    %v750 = vmul.f32 %v742, %v746
    %753 = vrot.lane.b32.xlu0 %v749, 64
    %v754 = vpop.permute.xlu0 %753
    %755 = vrot.lane.b32.xlu0 %v750, 64
    %v756 = vpop.permute.xlu0 %755
    %v759 = vadd.f32 %v671, %v754
    %v760 = vadd.f32 %v672, %v756
    %v761 = vtanh.pop %v759
    %v762 = vtanh.pop %v760
    %v763 = vsub.f32 1.0, %v727
    %v764 = vsub.f32 1.0, %v742
    %767 = vrot.lane.b32.xlu0 %v761, 96
    %v768 = vpop.permute.xlu0 %767
    %769 = vrot.lane.b32.xlu0 %v762, 96
    %v770 = vpop.permute.xlu0 %769
    %v773 = vmul.f32 %v763, %v768
    %v774 = vmul.f32 %v764, %v770
    %v775 = vmul.f32 %v727, %v659
    %v776 = vmul.f32 %v742, %v660
    %v777 = vadd.f32 %v773, %v775
    %v778 = vadd.f32 %v774, %v776
    %781 = vrot.lane.b32.xlu0 %v777, 96
    %v782 = vpop.permute.xlu0 %781
    %783 = vrot.lane.b32.xlu0 %v778, 96
    %v784 = vpop.permute.xlu0 %783
    %787 = vst.msk [vmem:[#allocation3 + $0x5] sm:$0x1] %vm195, %v782
    %788 = vst.msk [vmem:[#allocation3 + $0xd] sm:$0x1] %vm195, %v784
    %v789 = vld [vmem:[#allocation2 + $0x6] sm:$0x1]
    %v790 = vld [vmem:[#allocation2 + $0xe] sm:$0x1]
    %v791 = vrot.slane %v778, 7
    %v792 = vsel %vm201, %v791, %v777
    %793 = vrot.lane.b32.xlu0 %v792, 96
    %v794 = vpop.permute.xlu0 %793
    %v795 = vsel %vm83, %v794, 0
    %797 = vmatpush.msra.mxu0 0.0
    %798 = vmatpush.msra.mxu0 0.0
    %799 = vmatpush.msra.mxu0 0.0
    %800 = vmatpush.msra.mxu0 0.0
    %801 = vmatpush.msra.mxu0 0.0
    %802 = vmatpush.msra.mxu0 0.0
    %803 = vmatpush.msra.mxu0 0.0
    %804 = vmatpush.msra.mxu0 0.0
    %805 = vmatpush.msra.mxu0 0.0
    %806 = vmatpush.msra.mxu0 0.0
    %807 = vmatpush.msra.mxu0 0.0
    %808 = vmatpush.msra.mxu0 0.0
    %809 = vmatpush.msra.mxu0 %v76
    %810 = vmatpush.msra.mxu0 %v75
    %811 = vmatpush.msra.mxu0 %v74
    %812 = vmatpush.msra.mxu0 %v73
    %813 = vmatmul.f32.gmra.mxu0 %v795
    %v814 = vpop.f32.mrf.mxu0
    %v815 = vadd.f32 %v81, %v814
    %816 = vdwg.mxu0
    %v818 = vrot.slane %v815, 1
    %v821 = vadd.f32 %v789, %v815
    %v822 = vadd.f32 %v790, %v818
    %v823 = vxor.u32 %v821, 2147483648
    %v824 = vxor.u32 %v822, 2147483648
    %v825 = vmul.f32 %v823, 1.442695
    %v826 = vpow.pop %v825
    %v827 = vmul.f32 %v824, 1.442695
    %v828 = vpow.pop %v827
    %v829 = vadd.f32 %v826, 1.0
    %v830 = vadd.f32 %v828, 1.0
    %v831 = vrcp.pop %v829
    %v832 = vmul.f32 %v829, %v831
    %v833 = vsub.f32 1.0, %v832
    %v834 = vmul.f32 %v831, %v833
    %v835 = vadd.f32 %v831, %v834
    %vm836 = vweird.f32 %v829
    %vm837 = vweird.f32 %v831
    %vm838 = vmor %vm836, %vm837
    %v839 = vsel %vm838, %v831, %v835
    %v840 = vand.u32 2147483647, %v829
    %vm841 = vcmp.eq.f32.partialorder %v840, 8.507059e+37
    %v842 = vand.u32 %v829, 2147483648
    %v843 = vor.u32 1.1754944e-38, %v842
    %v844 = vsel %vm841, %v843, %v839
    %v845 = vmul.f32 1.0, %v844
    %v846 = vrcp.pop %v830
    %v847 = vmul.f32 %v830, %v846
    %v848 = vsub.f32 1.0, %v847
    %v849 = vmul.f32 %v846, %v848
    %v850 = vadd.f32 %v846, %v849
    %vm851 = vweird.f32 %v830
    %vm852 = vweird.f32 %v846
    %vm853 = vmor %vm851, %vm852
    %v854 = vsel %vm853, %v846, %v850
    %v855 = vand.u32 2147483647, %v830
    %vm856 = vcmp.eq.f32.partialorder %v855, 8.507059e+37
    %v857 = vand.u32 %v830, 2147483648
    %v858 = vor.u32 1.1754944e-38, %v857
    %v859 = vsel %vm856, %v858, %v854
    %v860 = vmul.f32 1.0, %v859
    %861 = vrot.lane.b32.xlu0 %v815, 64
    %v862 = vpop.permute.xlu0 %861
    %863 = vrot.lane.b32.xlu0 %v818, 64
    %v864 = vpop.permute.xlu0 %863
    %v867 = vmul.f32 %v845, %v862
    %v868 = vmul.f32 %v860, %v864
    %871 = vrot.lane.b32.xlu0 %v867, 64
    %v872 = vpop.permute.xlu0 %871
    %873 = vrot.lane.b32.xlu0 %v868, 64
    %v874 = vpop.permute.xlu0 %873
    %v877 = vadd.f32 %v789, %v872
    %v878 = vadd.f32 %v790, %v874
    %v879 = vtanh.pop %v877
    %v880 = vtanh.pop %v878
    %v881 = vsub.f32 1.0, %v845
    %v882 = vsub.f32 1.0, %v860
    %885 = vrot.lane.b32.xlu0 %v879, 96
    %v886 = vpop.permute.xlu0 %885
    %887 = vrot.lane.b32.xlu0 %v880, 96
    %v888 = vpop.permute.xlu0 %887
    %v891 = vmul.f32 %v881, %v886
    %v892 = vmul.f32 %v882, %v888
    %v893 = vmul.f32 %v845, %v777
    %v894 = vmul.f32 %v860, %v778
    %v895 = vadd.f32 %v891, %v893
    %v896 = vadd.f32 %v892, %v894
    %899 = vrot.lane.b32.xlu0 %v895, 96
    %v900 = vpop.permute.xlu0 %899
    %901 = vrot.lane.b32.xlu0 %v896, 96
    %v902 = vpop.permute.xlu0 %901
    %905 = vst.msk [vmem:[#allocation3 + $0x6] sm:$0x1] %vm195, %v900
    %906 = vst.msk [vmem:[#allocation3 + $0xe] sm:$0x1] %vm195, %v902
    %v907 = vld [vmem:[#allocation2 + $0x7] sm:$0x1]
    %v908 = vld [vmem:[#allocation2 + $0xf] sm:$0x1]
    %v909 = vrot.slane %v896, 7
    %v910 = vsel %vm201, %v909, %v895
    %911 = vrot.lane.b32.xlu0 %v910, 96
    %v912 = vpop.permute.xlu0 %911
    %v913 = vsel %vm83, %v912, 0
    %915 = vmatpush.msra.mxu0 0.0
    %916 = vmatpush.msra.mxu0 0.0
    %917 = vmatpush.msra.mxu0 0.0
    %918 = vmatpush.msra.mxu0 0.0
    %919 = vmatpush.msra.mxu0 0.0
    %920 = vmatpush.msra.mxu0 0.0
    %921 = vmatpush.msra.mxu0 0.0
    %922 = vmatpush.msra.mxu0 0.0
    %923 = vmatpush.msra.mxu0 0.0
    %924 = vmatpush.msra.mxu0 0.0
    %925 = vmatpush.msra.mxu0 0.0
    %926 = vmatpush.msra.mxu0 0.0
    %927 = vmatpush.msra.mxu0 %v76
    %928 = vmatpush.msra.mxu0 %v75
    %929 = vmatpush.msra.mxu0 %v74
    %930 = vmatpush.msra.mxu0 %v73
    %931 = vmatmul.f32.gmra.mxu0 %v913
    %v932 = vpop.f32.mrf.mxu0
    %v933 = vadd.f32 %v81, %v932
    %934 = vdwg.mxu0
    %v936 = vrot.slane %v933, 1
    %v939 = vadd.f32 %v907, %v933
    %v940 = vadd.f32 %v908, %v936
    %v941 = vxor.u32 %v939, 2147483648
    %v942 = vxor.u32 %v940, 2147483648
    %v943 = vmul.f32 %v941, 1.442695
    %v944 = vpow.pop %v943
    %v945 = vmul.f32 %v942, 1.442695
    %v946 = vpow.pop %v945
    %v947 = vadd.f32 %v944, 1.0
    %v948 = vadd.f32 %v946, 1.0
    %v949 = vrcp.pop %v947
    %v950 = vmul.f32 %v947, %v949
    %v951 = vsub.f32 1.0, %v950
    %v952 = vmul.f32 %v949, %v951
    %v953 = vadd.f32 %v949, %v952
    %vm954 = vweird.f32 %v947
    %vm955 = vweird.f32 %v949
    %vm956 = vmor %vm954, %vm955
    %v957 = vsel %vm956, %v949, %v953
    %v958 = vand.u32 2147483647, %v947
    %vm959 = vcmp.eq.f32.partialorder %v958, 8.507059e+37
    %v960 = vand.u32 %v947, 2147483648
    %v961 = vor.u32 1.1754944e-38, %v960
    %v962 = vsel %vm959, %v961, %v957
    %v963 = vmul.f32 1.0, %v962
    %v964 = vrcp.pop %v948
    %v965 = vmul.f32 %v948, %v964
    %v966 = vsub.f32 1.0, %v965
    %v967 = vmul.f32 %v964, %v966
    %v968 = vadd.f32 %v964, %v967
    %vm969 = vweird.f32 %v948
    %vm970 = vweird.f32 %v964
    %vm971 = vmor %vm969, %vm970
    %v972 = vsel %vm971, %v964, %v968
    %v973 = vand.u32 2147483647, %v948
    %vm974 = vcmp.eq.f32.partialorder %v973, 8.507059e+37
    %v975 = vand.u32 %v948, 2147483648
    %v976 = vor.u32 1.1754944e-38, %v975
    %v977 = vsel %vm974, %v976, %v972
    %v978 = vmul.f32 1.0, %v977
    %979 = vrot.lane.b32.xlu0 %v933, 64
    %v980 = vpop.permute.xlu0 %979
    %981 = vrot.lane.b32.xlu0 %v936, 64
    %v982 = vpop.permute.xlu0 %981
    %v985 = vmul.f32 %v963, %v980
    %v986 = vmul.f32 %v978, %v982
    %989 = vrot.lane.b32.xlu0 %v985, 64
    %v990 = vpop.permute.xlu0 %989
    %991 = vrot.lane.b32.xlu0 %v986, 64
    %v992 = vpop.permute.xlu0 %991
    %v995 = vadd.f32 %v907, %v990
    %v996 = vadd.f32 %v908, %v992
    %v997 = vtanh.pop %v995
    %v998 = vtanh.pop %v996
    %v999 = vsub.f32 1.0, %v963
    %v1000 = vsub.f32 1.0, %v978
    %1003 = vrot.lane.b32.xlu0 %v997, 96
    %v1004 = vpop.permute.xlu0 %1003
    %1005 = vrot.lane.b32.xlu0 %v998, 96
    %v1006 = vpop.permute.xlu0 %1005
    %v1009 = vmul.f32 %v999, %v1004
    %v1010 = vmul.f32 %v1000, %v1006
    %v1011 = vmul.f32 %v963, %v895
    %v1012 = vmul.f32 %v978, %v896
    %v1013 = vadd.f32 %v1009, %v1011
    %v1014 = vadd.f32 %v1010, %v1012
    %1017 = vrot.lane.b32.xlu0 %v1013, 96
    %v1018 = vpop.permute.xlu0 %1017
    %1019 = vrot.lane.b32.xlu0 %v1014, 96
    %v1020 = vpop.permute.xlu0 %1019
    %1023 = vst.msk [vmem:[#allocation3 + $0x7] sm:$0x1] %vm195, %v1018
    %1024 = vst.msk [vmem:[#allocation3 + $0xf] sm:$0x1] %vm195, %v1020
    %v1025 = vld [vmem:[#allocation3] sm:$0xff]
    %v1026 = vld [vmem:[#allocation3 + $0x8] sm:$0xff]
    %v1027 = vld [vmem:[%s3] sm:$0xff]
    %v1028 = vld [vmem:[%s3 + $0x8] sm:$0xff]
    %v1029 = vld [vmem:[%s3 + $0x10] sm:$0xff]
    %v1030 = vld [vmem:[%s3 + $0x18] sm:$0xff]
    %v1031 = vld [vmem:[%s6] sm:$0x1]
    %v1033 = vperm.slane %v1031, 0
    %v1036 = vsel %vm83, %v1025, 0
    %v1039 = vsel %vm83, %v1026, 0
    %1041 = vmatpush.msra.mxu0 0.0
    %1042 = vmatpush.msra.mxu0 0.0
    %1043 = vmatpush.msra.mxu0 0.0
    %1044 = vmatpush.msra.mxu0 0.0
    %1045 = vmatpush.msra.mxu0 0.0
    %1046 = vmatpush.msra.mxu0 0.0
    %1047 = vmatpush.msra.mxu0 0.0
    %1048 = vmatpush.msra.mxu0 0.0
    %1049 = vmatpush.msra.mxu0 0.0
    %1050 = vmatpush.msra.mxu0 0.0
    %1051 = vmatpush.msra.mxu0 0.0
    %1052 = vmatpush.msra.mxu0 0.0
    %1053 = vmatpush.msra.mxu0 %v1030
    %1054 = vmatpush.msra.mxu0 %v1029
    %1055 = vmatpush.msra.mxu0 %v1028
    %1056 = vmatpush.msra.mxu0 %v1027
    %1057 = vmatmul.f32.gmra.mxu0 %v1036
    %v1058 = vpop.f32.mrf.mxu0
    %v1059 = vadd.f32 %v1033, %v1058
    %1060 = vmatmul.f32.gmra.mxu0 %v1039
    %v1061 = vpop.f32.mrf.mxu0
    %v1062 = vadd.f32 %v1033, %v1061
    %1063 = vdwg.mxu0
    %vm1064 = vcmask 15360
    %1065 = vst.msk [vmem:[%s7] sm:$0xff] %vm1064, %v1059
    %1066 = vst.msk [vmem:[%s7 + $0x8] sm:$0xff] %vm1064, %v1062
    // Predicated region
    $region30: #{logic_gru_forward.1} parent=1 // pred_check
      _
    $region31: #{logic_gru_forward.1} parent=1 // pred_check_branch
      %1068 = sbr.rel (0) target = $region33
    $region32: #{logic_gru_forward.1} parent=1 // pred_region
      _
    $region33: #{logic_gru_forward.1} parent=1 // pred_fallthru
      _
    // Predicated region
    $region34: #{logic_gru_forward.1} parent=1 // pred_check
      _
    $region35: #{logic_gru_forward.1} parent=1 // pred_check_branch
      %1070 = sbr.rel (0) target = $region37
    $region36: #{logic_gru_forward.1} parent=1 // pred_region
      %1072 = vsyncadd [#allocation4], 0
      %s1073 = sshll.u32 [#allocation3], 4
      %s1074 = int_to_ptr.vmem [resolvable:$true] %s1073
      %s1075 = sshll.u32 %s8, 4
      %s1076 = int_to_ptr.hbm [resolvable:$true] %s1075
      %1081 = dma.vmem_to_hbm [thread:$0]  %s1074, 256, %s1076, [#allocation4], 128, 128, 8
    $region37: #{logic_gru_forward.1} parent=1 // pred_fallthru
      _
    // Predicated region
    $region38: #{logic_gru_forward.1} parent=1 // pred_check
      _
    $region39: #{logic_gru_forward.1} parent=1 // pred_check_branch
      %1083 = sbr.rel (0) target = $region41
    $region40: #{logic_gru_forward.1} parent=1 // pred_region
      _
    $region41: #{logic_gru_forward.1} parent=1 // pred_fallthru
      _
    // Predicated region
    $region42: #{logic_gru_forward.1} parent=1 // pred_check
      _
    $region43: #{logic_gru_forward.1} parent=1 // pred_check_branch
      %1085 = sbr.rel (0) target = $region45
    $region44: #{logic_gru_forward.1} parent=1 // pred_region
      %1087 = dma.done [#allocation4], 256
    $region45: #{logic_gru_forward.1} parent=1 // pred_fallthru
      _
    %1088 = vsyncpa [#allocation4], 1

</llo_original>
